<compile_context>
chip_gen: v7x
topology: tpu7x:2x2x1
jax: 0.10.0
libtpu: 0.0.40
codegen_flags: <defaults>
</compile_context>

<pallas_src>
import functools

import jax
import jax.numpy as jnp
from jax import lax
from jax.experimental import pallas as pl
from jax.experimental.pallas import tpu as pltpu

CPAD = 128  # padded channel / output-feature width (TPU lane width)


# ----------------------------------------------------------------------------
# helpers
# ----------------------------------------------------------------------------
def _round_up(x, m):
    return (x + m - 1) // m * m


def _largest_tile(n, cap, step):
    """Largest t <= cap with t % step == 0 and n % t == 0 (requires n % step == 0)."""
    best = step
    t = step
    limit = min(n, cap)
    while t <= limit:
        if n % t == 0:
            best = t
        t += step
    return best


# ----------------------------------------------------------------------------
# Pallas kernels
# ----------------------------------------------------------------------------
def _matmul_bias_kernel(x_ref, w_ref, b_ref, o_ref, *, relu: bool):
    # x: (tm, K)  w: (K, Npad)  b: (1, Npad)  ->  o: (tm, Npad)
    acc = jnp.dot(x_ref[...], w_ref[...], preferred_element_type=jnp.float32)
    acc = acc + b_ref[...]
    if relu:
        acc = jnp.maximum(acc, 0.0)
    o_ref[...] = acc.astype(o_ref.dtype)


def pallas_matmul_bias(x, w, b, *, relu):
    """relu(x @ w + b) with rows tiled over a parallel grid.

    w: (K, Npad) with Npad a multiple of 128 (lane-dense stores), VMEM-resident.
    """
    M, K = x.shape
    Kw, Npad = w.shape
    assert K == Kw and Npad % CPAD == 0
    Mp = _round_up(M, 8)
    cap = 512 if Mp <= 8192 else 2048           # bigger row tiles for big batches
    tm = _largest_tile(Mp, cap, 8)
    if Mp != M:
        x = jnp.pad(x, ((0, Mp - M), (0, 0)))
    out = pl.pallas_call(
        functools.partial(_matmul_bias_kernel, relu=relu),
        out_shape=jax.ShapeDtypeStruct((Mp, Npad), jnp.float32),
        grid=(Mp // tm,),
        in_specs=[
            pl.BlockSpec((tm, K), lambda i: (i, 0)),      # row tile (pipelined)
            pl.BlockSpec((K, Npad), lambda i: (0, 0)),    # weights resident
            pl.BlockSpec((1, Npad), lambda i: (0, 0)),    # bias resident
        ],
        out_specs=pl.BlockSpec((tm, Npad), lambda i: (i, 0)),
        compiler_params=pltpu.CompilerParams(dimension_semantics=("parallel",)),
    )(x, w, b)
    return out[:M] if Mp != M else out


def _maxpool_kernel(x_ref, o_ref):
    # x: (tr, 2, PW, 2*CPAD) -> o: (tr, PW, CPAD)
    # 2x2 window = (row pair in axis 1) x (column pair in the two 128-lane halves).
    x = x_ref[...]
    a = x[:, 0, :, :CPAD]
    b = x[:, 0, :, CPAD:]
    c = x[:, 1, :, :CPAD]
    d = x[:, 1, :, CPAD:]
    o_ref[...] = jnp.maximum(jnp.maximum(a, b), jnp.maximum(c, d))


def pallas_maxpool2x2(h_rows, n, oh, ow):
    """MaxPool2d(2, 2) on channels-last-padded conv output.

    h_rows: (n*oh*ow, CPAD), rows in (n, oh, ow) order -> (n, oh//2, ow//2, CPAD).
    The window taps are exposed purely by reshape (no strided-slice copies); the
    128-lane halves of the 256-wide last dim are tile-aligned splits in-kernel.
    """
    ph, pw = oh // 2, ow // 2
    x = h_rows.reshape(n * ph, 2, pw, 2 * CPAD)
    r = n * ph
    tr = _largest_tile(r, 128, 1)
    out = pl.pallas_call(
        _maxpool_kernel,
        out_shape=jax.ShapeDtypeStruct((r, pw, CPAD), jnp.float32),
        grid=(r // tr,),
        in_specs=[pl.BlockSpec((tr, 2, pw, 2 * CPAD), lambda i: (i, 0, 0, 0))],
        out_specs=pl.BlockSpec((tr, pw, CPAD), lambda i: (i, 0, 0)),
        compiler_params=pltpu.CompilerParams(dimension_semantics=("parallel",)),
    )(x)
    return out.reshape(n, ph, pw, CPAD)


def _fc_tail_kernel(x_ref, w1_ref, b1_ref, w2_ref, b2_ref, w3_ref, b3_ref, o_ref):
    # fc1 + ReLU + fc2 + ReLU + fc3 fused; all weights VMEM-resident.
    h = jnp.dot(x_ref[...], w1_ref[...], preferred_element_type=jnp.float32) + b1_ref[...]
    h = jnp.maximum(h, 0.0)
    h = jnp.dot(h, w2_ref[...], preferred_element_type=jnp.float32) + b2_ref[...]
    h = jnp.maximum(h, 0.0)
    h = jnp.dot(h, w3_ref[...], preferred_element_type=jnp.float32) + b3_ref[...]
    o_ref[...] = h.astype(o_ref.dtype)


def pallas_fc_tail(x, w1, b1, w2, b2, w3, b3):
    B, K = x.shape
    assert w1.shape[0] == K
    Bp = _round_up(B, 8)
    tb = _largest_tile(Bp, 256, 8)
    if Bp != B:
        x = jnp.pad(x, ((0, Bp - B), (0, 0)))
    out = pl.pallas_call(
        _fc_tail_kernel,
        out_shape=jax.ShapeDtypeStruct((Bp, CPAD), jnp.float32),
        grid=(Bp // tb,),
        in_specs=[
            pl.BlockSpec((tb, K), lambda i: (i, 0)),
            pl.BlockSpec(w1.shape, lambda i: (0, 0)),
            pl.BlockSpec(b1.shape, lambda i: (0, 0)),
            pl.BlockSpec(w2.shape, lambda i: (0, 0)),
            pl.BlockSpec(b2.shape, lambda i: (0, 0)),
            pl.BlockSpec(w3.shape, lambda i: (0, 0)),
            pl.BlockSpec(b3.shape, lambda i: (0, 0)),
        ],
        out_specs=pl.BlockSpec((tb, CPAD), lambda i: (i, 0)),
        compiler_params=pltpu.CompilerParams(dimension_semantics=("parallel",)),
    )(x, w1, b1, w2, b2, w3, b3)
    return out[:B] if Bp != B else out


# ----------------------------------------------------------------------------
# Conv via im2col (channels-last) + Pallas matmul
# ----------------------------------------------------------------------------
def conv2d_relu(x_nhwc, wmat, b, k):
    """Conv2d(stride=1, pad=0)+ReLU via im2col (K-order (kh, kw, cin)) + Pallas matmul.

    Returns flat rows (n*oh*ow, CPAD) in (n, oh, ow) order (channels-last, padded).
    """
    # TODO(synk): the im2col patch extraction is still XLA glue (materializes k*k
    # shifted copies); fully fusing it would need gather-style in-kernel indexing.
    n, h, w_, c = x_nhwc.shape
    oh, ow = h - k + 1, w_ - k + 1
    taps = [x_nhwc[:, kh:kh + oh, kw:kw + ow, :] for kh in range(k) for kw in range(k)]
    patches = jnp.stack(taps, axis=3).reshape(n * oh * ow, k * k * c)
    out = pallas_matmul_bias(patches, wmat, b, relu=True)   # (n*oh*ow, CPAD)
    return out, (n, oh, ow)


# ----------------------------------------------------------------------------
# Parameter init (PyTorch-like uniform) and one-time kernel-ready re-layout
# ----------------------------------------------------------------------------
def _uniform(key, shape, fan_in):
    bound = 1.0 / jnp.sqrt(jnp.asarray(fan_in, jnp.float32))
    return jax.random.uniform(key, shape, jnp.float32, -bound, bound)


def init_params(key):
    ks = jax.random.split(key, 10)
    return {
        "conv1_w": _uniform(ks[0], (6, 3, 5, 5), 3 * 5 * 5),
        "conv1_b": _uniform(ks[1], (6,), 3 * 5 * 5),
        "conv2_w": _uniform(ks[2], (16, 6, 5, 5), 6 * 5 * 5),
        "conv2_b": _uniform(ks[3], (16,), 6 * 5 * 5),
        "fc1_w": _uniform(ks[4], (120, 400), 400),
        "fc1_b": _uniform(ks[5], (120,), 400),
        "fc2_w": _uniform(ks[6], (84, 120), 120),
        "fc2_b": _uniform(ks[7], (84,), 120),
        "fc3_w": _uniform(ks[8], (10, 84), 84),
        "fc3_b": _uniform(ks[9], (10,), 84),
    }


def prepare_params(p):
    """One-time re-layout: transpose + zero-pad all weights into kernel-ready form."""
    def pad2d(a, rows, cols):
        return jnp.pad(a, ((0, rows - a.shape[0]), (0, cols - a.shape[1])))

    def conv_w(w):  # (Cout, Cin, kh, kw) -> (kh*kw*Cin, CPAD), row order (kh, kw, cin)
        cout, cin, kh, kw = w.shape
        wm = jnp.transpose(w, (2, 3, 1, 0)).reshape(kh * kw * cin, cout)
        return pad2d(wm, kh * kw * cin, CPAD)

    def bias(b):
        return pad2d(b.reshape(1, -1), 1, CPAD)

    # fc1 consumes PyTorch's (c, h, w) flatten of (16, 5, 5); our features are the
    # pooled tensor flattened as (h, w, c) with the channel pad already sliced off,
    # so only a (c,h,w)->(h,w,c) permutation of fc1's input-feature axis is needed.
    fc1 = p["fc1_w"].reshape(120, 16, 5, 5)
    fc1 = jnp.transpose(fc1, (0, 2, 3, 1))        # (120, 5, 5, 16)
    fc1 = fc1.reshape(120, 5 * 5 * 16).T          # (400, 120)
    fc1 = pad2d(fc1, 5 * 5 * 16, CPAD)            # (400, 128)

    return {
        "c1_w": conv_w(p["conv1_w"]), "c1_b": bias(p["conv1_b"]),
        "c2_w": conv_w(p["conv2_w"]), "c2_b": bias(p["conv2_b"]),
        "fc1_w": fc1, "fc1_b": bias(p["fc1_b"]),
        "fc2_w": pad2d(p["fc2_w"].T, CPAD, CPAD), "fc2_b": bias(p["fc2_b"]),
        "fc3_w": pad2d(p["fc3_w"].T, CPAD, CPAD), "fc3_b": bias(p["fc3_b"]),
    }


# ----------------------------------------------------------------------------
# Forward pass (mirrors Net.forward)
# ----------------------------------------------------------------------------
@jax.jit
def net_forward(prep, x):
    # x: (N, 3, 32, 32) NCHW float32 (PyTorch convention)
    n = x.shape[0]
    x = jnp.transpose(x, (0, 2, 3, 1))                                # NHWC (N,32,32,3)
    h, (_, oh, ow) = conv2d_relu(x, prep["c1_w"], prep["c1_b"], 5)    # (N*28*28, 128)
    p1 = pallas_maxpool2x2(h, n, oh, ow)                              # (N, 14, 14, 128)
    p1 = p1[:, :, :, :6]                                              # drop channel pad
    h, (_, oh, ow) = conv2d_relu(p1, prep["c2_w"], prep["c2_b"], 5)   # (N*10*10, 128)
    p2 = pallas_maxpool2x2(h, n, oh, ow)                              # (N, 5, 5, 128)
    feat = p2[:, :, :, :16].reshape(n, 5 * 5 * 16)                    # (N, 400) unpadded
    out = pallas_fc_tail(feat, prep["fc1_w"], prep["fc1_b"],
                         prep["fc2_w"], prep["fc2_b"],
                         prep["fc3_w"], prep["fc3_b"])                # (N, 128)
    return out[:, :10]


# ----------------------------------------------------------------------------
# Pure-JAX reference (for correctness check)
# ----------------------------------------------------------------------------
def net_forward_ref(params, x):
    hp = lax.Precision.HIGHEST
    dn = ("NCHW", "OIHW", "NCHW")
    y = lax.conv_general_dilated(x, params["conv1_w"], (1, 1), "VALID",
                                 dimension_numbers=dn, precision=hp)
    y = jax.nn.relu(y + params["conv1_b"].reshape(1, -1, 1, 1))
    y = lax.reduce_window(y, -jnp.inf, lax.max, (1, 1, 2, 2), (1, 1, 2, 2), "VALID")
    y = lax.conv_general_dilated(y, params["conv2_w"], (1, 1), "VALID",
                                 dimension_numbers=dn, precision=hp)
    y = jax.nn.relu(y + params["conv2_b"].reshape(1, -1, 1, 1))
    y = lax.reduce_window(y, -jnp.inf, lax.max, (1, 1, 2, 2), (1, 1, 2, 2), "VALID")
    y = y.reshape(y.shape[0], -1)
    y = jax.nn.relu(jnp.dot(y, params["fc1_w"].T, precision=hp) + params["fc1_b"])
    y = jax.nn.relu(jnp.dot(y, params["fc2_w"].T, precision=hp) + params["fc2_b"])
    return jnp.dot(y, params["fc3_w"].T, precision=hp) + params["fc3_b"]


if __name__ == "__main__":
    key = jax.random.PRNGKey(0)
    k_params, k_x = jax.random.split(key)
    params = init_params(k_params)
    prep = prepare_params(params)
    # Net's 16*5*5 flatten implies a 32x32 spatial input.
    x = jax.random.normal(k_x, (2, 3, 32, 32), jnp.float32)

    out = net_forward(prep, x)
    jax.block_until_ready(out)
    assert out.shape == (2, 10), out.shape
    assert out.dtype == jnp.float32

    ref = net_forward_ref(params, x)
    err = float(jnp.max(jnp.abs(out - ref)))
    assert err < 2e-2, f"mismatch vs reference: max abs err = {err}"
    print("KERNEL_OK")
</pallas_src>

<mosaic_0001>
module attributes {stable_mosaic.version = 11 : i64} {
  func.func @_matmul_bias_kernel(%arg0: i32, %arg1: memref<392x75xf32, #tpu.memory_space<vmem>>, %arg2: memref<75x128xf32, #tpu.memory_space<vmem>>, %arg3: memref<1x128xf32, #tpu.memory_space<vmem>>, %arg4: memref<392x128xf32, #tpu.memory_space<vmem>>) attributes {dimension_semantics = [#tpu.dimension_semantics<parallel>], iteration_bounds = array<i64: 4>, scalar_prefetch = 0 : i64, scratch_operands = 0 : i64, tpu.core_type = #tpu.core_type<tc>, window_params = [{transform_indices = @transform_0, window_bounds = array<i64: 392, 75>}, {pipeline_mode = #tpu.pipeline_mode<synchronous>, transform_indices = @transform_1, window_bounds = array<i64: 75, 128>}, {pipeline_mode = #tpu.pipeline_mode<synchronous>, transform_indices = @transform_2, window_bounds = array<i64: 1, 128>}, {transform_indices = @transform_3, window_bounds = array<i64: 392, 128>}]} {
    %c0 = arith.constant 0 : index
    %c0_0 = arith.constant 0 : index
    %0 = vector.load %arg1[%c0, %c0_0] : memref<392x75xf32, #tpu.memory_space<vmem>>, vector<392x75xf32>
    %c0_1 = arith.constant 0 : index
    %c0_2 = arith.constant 0 : index
    %1 = vector.load %arg2[%c0_1, %c0_2] : memref<75x128xf32, #tpu.memory_space<vmem>>, vector<75x128xf32>
    %cst = arith.constant dense<0.000000e+00> : vector<392x128xf32>
    %2 = tpu.matmul %0, %1, %cst {dimension_numbers = #tpu.dot_dimension_numbers<[1], [0], [0], [1], [0, 0, 1, 1], [], []>} : vector<392x75xf32>, vector<75x128xf32>, vector<392x128xf32> -> vector<392x128xf32>
    %c0_3 = arith.constant 0 : index
    %c0_4 = arith.constant 0 : index
    %3 = vector.load %arg3[%c0_3, %c0_4] : memref<1x128xf32, #tpu.memory_space<vmem>>, vector<1x128xf32>
    %4 = vector.broadcast %3 : vector<1x128xf32> to vector<392x128xf32>
    %5 = arith.addf %2, %4 : vector<392x128xf32>
    %cst_5 = arith.constant 0.000000e+00 : f32
    %6 = vector.broadcast %cst_5 : f32 to vector<392x128xf32>
    %7 = arith.maximumf %5, %6 : vector<392x128xf32>
    %c0_6 = arith.constant 0 : index
    %c0_7 = arith.constant 0 : index
    %8 = vector.load %arg4[%c0_6, %c0_7] : memref<392x128xf32, #tpu.memory_space<vmem>>, vector<392x128xf32>
    tpu.vector_store %arg4[%c0_6, %c0_7], %7 {strides = array<i32>} : memref<392x128xf32, #tpu.memory_space<vmem>>, vector<392x128xf32>,
    return
  }
  func.func @transform_0(%arg0: i32) -> (i32, i32) {
    %c0_i32 = arith.constant 0 : i32
    %c0_i32_0 = arith.constant 0 : i32
    return %arg0, %c0_i32 : i32, i32
  }
  func.func @transform_1(%arg0: i32) -> (i32, i32) {
    %c0_i32 = arith.constant 0 : i32
    %c0_i32_0 = arith.constant 0 : i32
    %c0_i32_1 = arith.constant 0 : i32
    return %c0_i32, %c0_i32_0 : i32, i32
  }
  func.func @transform_2(%arg0: i32) -> (i32, i32) {
    %c0_i32 = arith.constant 0 : i32
    %c0_i32_0 = arith.constant 0 : i32
    %c0_i32_1 = arith.constant 0 : i32
    return %c0_i32, %c0_i32_0 : i32, i32
  }
  func.func @transform_3(%arg0: i32) -> (i32, i32) {
    %c0_i32 = arith.constant 0 : i32
    %c0_i32_0 = arith.constant 0 : i32
    return %arg0, %c0_i32 : i32, i32
  }
}

module attributes {stable_mosaic.version = 11 : i64} {
  func.func @_maxpool_kernel(%arg0: i32, %arg1: memref<28x2x14x256xf32, #tpu.memory_space<vmem>>, %arg2: memref<28x14x128xf32, #tpu.memory_space<vmem>>) attributes {dimension_semantics = [#tpu.dimension_semantics<parallel>], iteration_bounds = array<i64: 1>, scalar_prefetch = 0 : i64, scratch_operands = 0 : i64, tpu.core_type = #tpu.core_type<tc>, window_params = [{transform_indices = @transform_0, window_bounds = array<i64: 28, 2, 14, 256>}, {transform_indices = @transform_1, window_bounds = array<i64: 28, 14, 128>}]} {
    %c0 = arith.constant 0 : index
    %c0_0 = arith.constant 0 : index
    %c0_1 = arith.constant 0 : index
    %c0_2 = arith.constant 0 : index
    %0 = vector.load %arg1[%c0, %c0_0, %c0_1, %c0_2] : memref<28x2x14x256xf32, #tpu.memory_space<vmem>>, vector<28x2x14x256xf32>
    %1 = vector.extract_strided_slice %0 {offsets = [0, 0, 0, 0], sizes = [28, 1, 14, 128], strides = [1, 1, 1, 1]} : vector<28x2x14x256xf32> to vector<28x1x14x128xf32>
    %2 = vector.shape_cast %1 : vector<28x1x14x128xf32> to vector<28x14x128xf32>
    %3 = vector.extract_strided_slice %0 {offsets = [0, 0, 0, 128], sizes = [28, 1, 14, 128], strides = [1, 1, 1, 1]} : vector<28x2x14x256xf32> to vector<28x1x14x128xf32>
    %4 = vector.shape_cast %3 : vector<28x1x14x128xf32> to vector<28x14x128xf32>
    %5 = vector.extract_strided_slice %0 {offsets = [0, 1, 0, 0], sizes = [28, 1, 14, 128], strides = [1, 1, 1, 1]} : vector<28x2x14x256xf32> to vector<28x1x14x128xf32>
    %6 = vector.shape_cast %5 : vector<28x1x14x128xf32> to vector<28x14x128xf32>
    %7 = vector.extract_strided_slice %0 {offsets = [0, 1, 0, 128], sizes = [28, 1, 14, 128], strides = [1, 1, 1, 1]} : vector<28x2x14x256xf32> to vector<28x1x14x128xf32>
    %8 = vector.shape_cast %7 : vector<28x1x14x128xf32> to vector<28x14x128xf32>
    %9 = arith.maximumf %2, %4 : vector<28x14x128xf32>
    %10 = arith.maximumf %6, %8 : vector<28x14x128xf32>
    %11 = arith.maximumf %9, %10 : vector<28x14x128xf32>
    %c0_3 = arith.constant 0 : index
    %c0_4 = arith.constant 0 : index
    %c0_5 = arith.constant 0 : index
    %12 = vector.load %arg2[%c0_3, %c0_4, %c0_5] : memref<28x14x128xf32, #tpu.memory_space<vmem>>, vector<28x14x128xf32>
    tpu.vector_store %arg2[%c0_3, %c0_4, %c0_5], %11 {strides = array<i32>} : memref<28x14x128xf32, #tpu.memory_space<vmem>>, vector<28x14x128xf32>,
    return
  }
  func.func @transform_0(%arg0: i32) -> (i32, i32, i32, i32) {
    %c0_i32 = arith.constant 0 : i32
    %c0_i32_0 = arith.constant 0 : i32
    %c0_i32_1 = arith.constant 0 : i32
    %c0_i32_2 = arith.constant 0 : i32
    return %arg0, %c0_i32, %c0_i32_0, %c0_i32_1 : i32, i32, i32, i32
  }
  func.func @transform_1(%arg0: i32) -> (i32, i32, i32) {
    %c0_i32 = arith.constant 0 : i32
    %c0_i32_0 = arith.constant 0 : i32
    %c0_i32_1 = arith.constant 0 : i32
    return %arg0, %c0_i32, %c0_i32_0 : i32, i32, i32
  }
}

module attributes {stable_mosaic.version = 11 : i64} {
  func.func @_matmul_bias_kernel(%arg0: i32, %arg1: memref<200x150xf32, #tpu.memory_space<vmem>>, %arg2: memref<150x128xf32, #tpu.memory_space<vmem>>, %arg3: memref<1x128xf32, #tpu.memory_space<vmem>>, %arg4: memref<200x128xf32, #tpu.memory_space<vmem>>) attributes {dimension_semantics = [#tpu.dimension_semantics<parallel>], iteration_bounds = array<i64: 1>, scalar_prefetch = 0 : i64, scratch_operands = 0 : i64, tpu.core_type = #tpu.core_type<tc>, window_params = [{transform_indices = @transform_0, window_bounds = array<i64: 200, 150>}, {pipeline_mode = #tpu.pipeline_mode<synchronous>, transform_indices = @transform_1, window_bounds = array<i64: 150, 128>}, {pipeline_mode = #tpu.pipeline_mode<synchronous>, transform_indices = @transform_2, window_bounds = array<i64: 1, 128>}, {transform_indices = @transform_3, window_bounds = array<i64: 200, 128>}]} {
    %c0 = arith.constant 0 : index
    %c0_0 = arith.constant 0 : index
    %0 = vector.load %arg1[%c0, %c0_0] : memref<200x150xf32, #tpu.memory_space<vmem>>, vector<200x150xf32>
    %c0_1 = arith.constant 0 : index
    %c0_2 = arith.constant 0 : index
    %1 = vector.load %arg2[%c0_1, %c0_2] : memref<150x128xf32, #tpu.memory_space<vmem>>, vector<150x128xf32>
    %cst = arith.constant dense<0.000000e+00> : vector<200x128xf32>
    %2 = tpu.matmul %0, %1, %cst {dimension_numbers = #tpu.dot_dimension_numbers<[1], [0], [0], [1], [0, 0, 1, 1], [], []>} : vector<200x150xf32>, vector<150x128xf32>, vector<200x128xf32> -> vector<200x128xf32>
    %c0_3 = arith.constant 0 : index
    %c0_4 = arith.constant 0 : index
    %3 = vector.load %arg3[%c0_3, %c0_4] : memref<1x128xf32, #tpu.memory_space<vmem>>, vector<1x128xf32>
    %4 = vector.broadcast %3 : vector<1x128xf32> to vector<200x128xf32>
    %5 = arith.addf %2, %4 : vector<200x128xf32>
    %cst_5 = arith.constant 0.000000e+00 : f32
    %6 = vector.broadcast %cst_5 : f32 to vector<200x128xf32>
    %7 = arith.maximumf %5, %6 : vector<200x128xf32>
    %c0_6 = arith.constant 0 : index
    %c0_7 = arith.constant 0 : index
    %8 = vector.load %arg4[%c0_6, %c0_7] : memref<200x128xf32, #tpu.memory_space<vmem>>, vector<200x128xf32>
    tpu.vector_store %arg4[%c0_6, %c0_7], %7 {strides = array<i32>} : memref<200x128xf32, #tpu.memory_space<vmem>>, vector<200x128xf32>,
    return
  }
  func.func @transform_0(%arg0: i32) -> (i32, i32) {
    %c0_i32 = arith.constant 0 : i32
    %c0_i32_0 = arith.constant 0 : i32
    return %arg0, %c0_i32 : i32, i32
  }
  func.func @transform_1(%arg0: i32) -> (i32, i32) {
    %c0_i32 = arith.constant 0 : i32
    %c0_i32_0 = arith.constant 0 : i32
    %c0_i32_1 = arith.constant 0 : i32
    return %c0_i32, %c0_i32_0 : i32, i32
  }
  func.func @transform_2(%arg0: i32) -> (i32, i32) {
    %c0_i32 = arith.constant 0 : i32
    %c0_i32_0 = arith.constant 0 : i32
    %c0_i32_1 = arith.constant 0 : i32
    return %c0_i32, %c0_i32_0 : i32, i32
  }
  func.func @transform_3(%arg0: i32) -> (i32, i32) {
    %c0_i32 = arith.constant 0 : i32
    %c0_i32_0 = arith.constant 0 : i32
    return %arg0, %c0_i32 : i32, i32
  }
}

module attributes {stable_mosaic.version = 11 : i64} {
  func.func @_maxpool_kernel(%arg0: i32, %arg1: memref<10x2x5x256xf32, #tpu.memory_space<vmem>>, %arg2: memref<10x5x128xf32, #tpu.memory_space<vmem>>) attributes {dimension_semantics = [#tpu.dimension_semantics<parallel>], iteration_bounds = array<i64: 1>, scalar_prefetch = 0 : i64, scratch_operands = 0 : i64, tpu.core_type = #tpu.core_type<tc>, window_params = [{transform_indices = @transform_0, window_bounds = array<i64: 10, 2, 5, 256>}, {transform_indices = @transform_1, window_bounds = array<i64: 10, 5, 128>}]} {
    %c0 = arith.constant 0 : index
    %c0_0 = arith.constant 0 : index
    %c0_1 = arith.constant 0 : index
    %c0_2 = arith.constant 0 : index
    %0 = vector.load %arg1[%c0, %c0_0, %c0_1, %c0_2] : memref<10x2x5x256xf32, #tpu.memory_space<vmem>>, vector<10x2x5x256xf32>
    %1 = vector.extract_strided_slice %0 {offsets = [0, 0, 0, 0], sizes = [10, 1, 5, 128], strides = [1, 1, 1, 1]} : vector<10x2x5x256xf32> to vector<10x1x5x128xf32>
    %2 = vector.shape_cast %1 : vector<10x1x5x128xf32> to vector<10x5x128xf32>
    %3 = vector.extract_strided_slice %0 {offsets = [0, 0, 0, 128], sizes = [10, 1, 5, 128], strides = [1, 1, 1, 1]} : vector<10x2x5x256xf32> to vector<10x1x5x128xf32>
    %4 = vector.shape_cast %3 : vector<10x1x5x128xf32> to vector<10x5x128xf32>
    %5 = vector.extract_strided_slice %0 {offsets = [0, 1, 0, 0], sizes = [10, 1, 5, 128], strides = [1, 1, 1, 1]} : vector<10x2x5x256xf32> to vector<10x1x5x128xf32>
    %6 = vector.shape_cast %5 : vector<10x1x5x128xf32> to vector<10x5x128xf32>
    %7 = vector.extract_strided_slice %0 {offsets = [0, 1, 0, 128], sizes = [10, 1, 5, 128], strides = [1, 1, 1, 1]} : vector<10x2x5x256xf32> to vector<10x1x5x128xf32>
    %8 = vector.shape_cast %7 : vector<10x1x5x128xf32> to vector<10x5x128xf32>
    %9 = arith.maximumf %2, %4 : vector<10x5x128xf32>
    %10 = arith.maximumf %6, %8 : vector<10x5x128xf32>
    %11 = arith.maximumf %9, %10 : vector<10x5x128xf32>
    %c0_3 = arith.constant 0 : index
    %c0_4 = arith.constant 0 : index
    %c0_5 = arith.constant 0 : index
    %12 = vector.load %arg2[%c0_3, %c0_4, %c0_5] : memref<10x5x128xf32, #tpu.memory_space<vmem>>, vector<10x5x128xf32>
    tpu.vector_store %arg2[%c0_3, %c0_4, %c0_5], %11 {strides = array<i32>} : memref<10x5x128xf32, #tpu.memory_space<vmem>>, vector<10x5x128xf32>,
    return
  }
  func.func @transform_0(%arg0: i32) -> (i32, i32, i32, i32) {
    %c0_i32 = arith.constant 0 : i32
    %c0_i32_0 = arith.constant 0 : i32
    %c0_i32_1 = arith.constant 0 : i32
    %c0_i32_2 = arith.constant 0 : i32
    return %arg0, %c0_i32, %c0_i32_0, %c0_i32_1 : i32, i32, i32, i32
  }
  func.func @transform_1(%arg0: i32) -> (i32, i32, i32) {
    %c0_i32 = arith.constant 0 : i32
    %c0_i32_0 = arith.constant 0 : i32
    %c0_i32_1 = arith.constant 0 : i32
    return %arg0, %c0_i32, %c0_i32_0 : i32, i32, i32
  }
}

module attributes {stable_mosaic.version = 11 : i64} {
  func.func @_fc_tail_kernel(%arg0: i32, %arg1: memref<8x400xf32, #tpu.memory_space<vmem>>, %arg2: memref<400x128xf32, #tpu.memory_space<vmem>>, %arg3: memref<1x128xf32, #tpu.memory_space<vmem>>, %arg4: memref<128x128xf32, #tpu.memory_space<vmem>>, %arg5: memref<1x128xf32, #tpu.memory_space<vmem>>, %arg6: memref<128x128xf32, #tpu.memory_space<vmem>>, %arg7: memref<1x128xf32, #tpu.memory_space<vmem>>, %arg8: memref<8x128xf32, #tpu.memory_space<vmem>>) attributes {dimension_semantics = [#tpu.dimension_semantics<parallel>], iteration_bounds = array<i64: 1>, scalar_prefetch = 0 : i64, scratch_operands = 0 : i64, tpu.core_type = #tpu.core_type<tc>, window_params = [{transform_indices = @transform_0, window_bounds = array<i64: 8, 400>}, {pipeline_mode = #tpu.pipeline_mode<synchronous>, transform_indices = @transform_1, window_bounds = array<i64: 400, 128>}, {pipeline_mode = #tpu.pipeline_mode<synchronous>, transform_indices = @transform_2, window_bounds = array<i64: 1, 128>}, {pipeline_mode = #tpu.pipeline_mode<synchronous>, transform_indices = @transform_3, window_bounds = array<i64: 128, 128>}, {pipeline_mode = #tpu.pipeline_mode<synchronous>, transform_indices = @transform_4, window_bounds = array<i64: 1, 128>}, {pipeline_mode = #tpu.pipeline_mode<synchronous>, transform_indices = @transform_5, window_bounds = array<i64: 128, 128>}, {pipeline_mode = #tpu.pipeline_mode<synchronous>, transform_indices = @transform_6, window_bounds = array<i64: 1, 128>}, {transform_indices = @transform_7, window_bounds = array<i64: 8, 128>}]} {
    %c0 = arith.constant 0 : index
    %c0_0 = arith.constant 0 : index
    %0 = vector.load %arg1[%c0, %c0_0] : memref<8x400xf32, #tpu.memory_space<vmem>>, vector<8x400xf32>
    %c0_1 = arith.constant 0 : index
    %c0_2 = arith.constant 0 : index
    %1 = vector.load %arg2[%c0_1, %c0_2] : memref<400x128xf32, #tpu.memory_space<vmem>>, vector<400x128xf32>
    %cst = arith.constant dense<0.000000e+00> : vector<8x128xf32>
    %2 = tpu.matmul %0, %1, %cst {dimension_numbers = #tpu.dot_dimension_numbers<[1], [0], [0], [1], [0, 0, 1, 1], [], []>} : vector<8x400xf32>, vector<400x128xf32>, vector<8x128xf32> -> vector<8x128xf32>
    %c0_3 = arith.constant 0 : index
    %c0_4 = arith.constant 0 : index
    %3 = vector.load %arg3[%c0_3, %c0_4] : memref<1x128xf32, #tpu.memory_space<vmem>>, vector<1x128xf32>
    %4 = vector.broadcast %3 : vector<1x128xf32> to vector<8x128xf32>
    %5 = arith.addf %2, %4 : vector<8x128xf32>
    %cst_5 = arith.constant 0.000000e+00 : f32
    %6 = vector.broadcast %cst_5 : f32 to vector<8x128xf32>
    %7 = arith.maximumf %5, %6 : vector<8x128xf32>
    %c0_6 = arith.constant 0 : index
    %c0_7 = arith.constant 0 : index
    %8 = vector.load %arg4[%c0_6, %c0_7] : memref<128x128xf32, #tpu.memory_space<vmem>>, vector<128x128xf32>
    %cst_8 = arith.constant dense<0.000000e+00> : vector<8x128xf32>
    %9 = tpu.matmul %7, %8, %cst_8 {dimension_numbers = #tpu.dot_dimension_numbers<[1], [0], [0], [1], [0, 0, 1, 1], [], []>} : vector<8x128xf32>, vector<128x128xf32>, vector<8x128xf32> -> vector<8x128xf32>
    %c0_9 = arith.constant 0 : index
    %c0_10 = arith.constant 0 : index
    %10 = vector.load %arg5[%c0_9, %c0_10] : memref<1x128xf32, #tpu.memory_space<vmem>>, vector<1x128xf32>
    %11 = vector.broadcast %10 : vector<1x128xf32> to vector<8x128xf32>
    %12 = arith.addf %9, %11 : vector<8x128xf32>
    %cst_11 = arith.constant 0.000000e+00 : f32
    %13 = vector.broadcast %cst_11 : f32 to vector<8x128xf32>
    %14 = arith.maximumf %12, %13 : vector<8x128xf32>
    %c0_12 = arith.constant 0 : index
    %c0_13 = arith.constant 0 : index
    %15 = vector.load %arg6[%c0_12, %c0_13] : memref<128x128xf32, #tpu.memory_space<vmem>>, vector<128x128xf32>
    %cst_14 = arith.constant dense<0.000000e+00> : vector<8x128xf32>
    %16 = tpu.matmul %14, %15, %cst_14 {dimension_numbers = #tpu.dot_dimension_numbers<[1], [0], [0], [1], [0, 0, 1, 1], [], []>} : vector<8x128xf32>, vector<128x128xf32>, vector<8x128xf32> -> vector<8x128xf32>
    %c0_15 = arith.constant 0 : index
    %c0_16 = arith.constant 0 : index
    %17 = vector.load %arg7[%c0_15, %c0_16] : memref<1x128xf32, #tpu.memory_space<vmem>>, vector<1x128xf32>
    %18 = vector.broadcast %17 : vector<1x128xf32> to vector<8x128xf32>
    %19 = arith.addf %16, %18 : vector<8x128xf32>
    %c0_17 = arith.constant 0 : index
    %c0_18 = arith.constant 0 : index
    %20 = vector.load %arg8[%c0_17, %c0_18] : memref<8x128xf32, #tpu.memory_space<vmem>>, vector<8x128xf32>
    tpu.vector_store %arg8[%c0_17, %c0_18], %19 {strides = array<i32>} : memref<8x128xf32, #tpu.memory_space<vmem>>, vector<8x128xf32>,
    return
  }
  func.func @transform_0(%arg0: i32) -> (i32, i32) {
    %c0_i32 = arith.constant 0 : i32
    %c0_i32_0 = arith.constant 0 : i32
    return %arg0, %c0_i32 : i32, i32
  }
  func.func @transform_1(%arg0: i32) -> (i32, i32) {
    %c0_i32 = arith.constant 0 : i32
    %c0_i32_0 = arith.constant 0 : i32
    %c0_i32_1 = arith.constant 0 : i32
    return %c0_i32, %c0_i32_0 : i32, i32
  }
  func.func @transform_2(%arg0: i32) -> (i32, i32) {
    %c0_i32 = arith.constant 0 : i32
    %c0_i32_0 = arith.constant 0 : i32
    %c0_i32_1 = arith.constant 0 : i32
    return %c0_i32, %c0_i32_0 : i32, i32
  }
  func.func @transform_3(%arg0: i32) -> (i32, i32) {
    %c0_i32 = arith.constant 0 : i32
    %c0_i32_0 = arith.constant 0 : i32
    %c0_i32_1 = arith.constant 0 : i32
    return %c0_i32, %c0_i32_0 : i32, i32
  }
  func.func @transform_4(%arg0: i32) -> (i32, i32) {
    %c0_i32 = arith.constant 0 : i32
    %c0_i32_0 = arith.constant 0 : i32
    %c0_i32_1 = arith.constant 0 : i32
    return %c0_i32, %c0_i32_0 : i32, i32
  }
  func.func @transform_5(%arg0: i32) -> (i32, i32) {
    %c0_i32 = arith.constant 0 : i32
    %c0_i32_0 = arith.constant 0 : i32
    %c0_i32_1 = arith.constant 0 : i32
    return %c0_i32, %c0_i32_0 : i32, i32
  }
  func.func @transform_6(%arg0: i32) -> (i32, i32) {
    %c0_i32 = arith.constant 0 : i32
    %c0_i32_0 = arith.constant 0 : i32
    %c0_i32_1 = arith.constant 0 : i32
    return %c0_i32, %c0_i32_0 : i32, i32
  }
  func.func @transform_7(%arg0: i32) -> (i32, i32) {
    %c0_i32 = arith.constant 0 : i32
    %c0_i32_0 = arith.constant 0 : i32
    return %arg0, %c0_i32 : i32, i32
  }
}

</mosaic_0001>

<llo_original>
// kernel: net_forward.5
$region0: #{net_forward.5}
  #allocation0 [shape = 'u32[]', space=smem, size = 0x4, offset = 0x4, fixed_abs, tag = 'smem constant byte address 0x4 - core index']
  #allocation1 [shape = 'u32[144,128]{1,0:T(1,128)}', space=vmem, size = 0x12000, scoped, tag = 'internal scratch']
  %s0 = inlined_call_operand.vmem [shape: f32[1568,75], index: 0, kind: input, shape index: {}]
  %s1 = inlined_call_operand.vmem [shape: f32[75,128], index: 1, kind: input, shape index: {}]
  %s2 = inlined_call_operand.vmem [shape: f32[1,128], index: 2, kind: input, shape index: {}]
  %s3 = inlined_call_operand.vmem [shape: f32[1568,128], index: 3, kind: output, shape index: {}]
  %s4 = sld [smem:[#allocation0]]
  $region45: #{net_forward.5} parent=0
    _
  %s6 = ssub.s32 1, %s4
  %s7 = scalar_select 0, %s6, %s4
  loop: start=0, step=1, limit=6
  $region2: #{net_forward.5} parent=0 // loop_pre_header
    _
  $region3: #{net_forward.5} parent=0 // loop_header
    %s9 = sphi 0, %s13
    %p10 = scmp.ge.s32.totalorder %s9, 6
    %s19 = sphi 0, %s21
    %s22 = sphi 0, %s19
    %s23 = sphi 0, %s22
    %s39 = sphi 0, %s23
    %s43 = sphi 0, %s43
    %s45 = sphi 0, %s43
    %s46 = sphi 0, %s45
    %s60 = sphi 0, %s46
    %s64 = sphi 0, %s64
    %s66 = sphi 0, %s64
    %s67 = sphi 0, %s66
    %s81 = sphi 0, %s67
    %s87 = sphi 0, %s89
    %s90 = sphi 0, %s87
    %s91 = sphi 0, %s90
    %s107 = sphi 0, %s91
  $region4: #{net_forward.5} parent=0 // loop_header_branch
    %12 = sbr.rel (%p10) target = $region8
  $region5: #{net_forward.5} parent=0 // loop_body
    %s14 = ssub.s32 %s9, 1
    %s15 = ssub.s32 %s9, 2
    %s16 = sadd.s32 %s9, 1
    %s17 = ssub.s32 %s9, %s16
    %p18 = scmp.eq.s32.totalorder %s17, 0
    %s20 = sadd.s32 %s19, 1
    %s21 = scalar_select %p18, %s19, %s20
    %p24 = pneg %p18
    %p25 = scmp.eq.s32.totalorder %s9, 3
    %p26 = por %p24, %p25
    %p27 = scmp.ne.s32.totalorder %s19, %s22
    %p28 = scmp.eq.s32.totalorder %s9, 0
    %p29 = por %p27, %p28
    %p30 = scmp.ne.s32.totalorder %s19, %s22
    %p31 = scmp.eq.s32.totalorder %s14, 3
    %p32 = por %p30, %p31
    %p33 = scmp.ne.s32.totalorder %s22, %s23
    %p34 = scmp.eq.s32.totalorder %s14, 0
    %p35 = por %p33, %p34
    %p36 = scmp.ne.s32.totalorder %s22, %s23
    %p37 = scmp.eq.s32.totalorder %s15, 3
    %p38 = por %p36, %p37
    %p40 = scmp.ne.s32.totalorder %s23, %s39
    %p41 = scmp.eq.s32.totalorder %s15, 0
    %p42 = por %p40, %p41
    %s44 = sadd.s32 %s43, 1
    %p47 = scmp.eq.s32.totalorder %s9, 3
    %p48 = scmp.ne.s32.totalorder %s43, %s45
    %p49 = scmp.eq.s32.totalorder %s9, 0
    %p50 = por %p48, %p49
    %p51 = scmp.ne.s32.totalorder %s43, %s45
    %p52 = scmp.eq.s32.totalorder %s14, 3
    %p53 = por %p51, %p52
    %p54 = scmp.ne.s32.totalorder %s45, %s46
    %p55 = scmp.eq.s32.totalorder %s14, 0
    %p56 = por %p54, %p55
    %p57 = scmp.ne.s32.totalorder %s45, %s46
    %p58 = scmp.eq.s32.totalorder %s15, 3
    %p59 = por %p57, %p58
    %p61 = scmp.ne.s32.totalorder %s46, %s60
    %p62 = scmp.eq.s32.totalorder %s15, 0
    %p63 = por %p61, %p62
    %s65 = sadd.s32 %s64, 1
    %p68 = scmp.eq.s32.totalorder %s9, 3
    %p69 = scmp.ne.s32.totalorder %s64, %s66
    %p70 = scmp.eq.s32.totalorder %s9, 0
    %p71 = por %p69, %p70
    %p72 = scmp.ne.s32.totalorder %s64, %s66
    %p73 = scmp.eq.s32.totalorder %s14, 3
    %p74 = por %p72, %p73
    %p75 = scmp.ne.s32.totalorder %s66, %s67
    %p76 = scmp.eq.s32.totalorder %s14, 0
    %p77 = por %p75, %p76
    %p78 = scmp.ne.s32.totalorder %s66, %s67
    %p79 = scmp.eq.s32.totalorder %s15, 3
    %p80 = por %p78, %p79
    %p82 = scmp.ne.s32.totalorder %s67, %s81
    %p83 = scmp.eq.s32.totalorder %s15, 0
    %p84 = por %p82, %p83
    %s85 = ssub.s32 %s9, %s16
    %p86 = scmp.eq.s32.totalorder %s85, 0
    %s88 = sadd.s32 %s87, 1
    %s89 = scalar_select %p86, %s87, %s88
    %p92 = pneg %p86
    %p93 = scmp.eq.s32.totalorder %s9, 3
    %p94 = por %p92, %p93
    %p95 = scmp.ne.s32.totalorder %s87, %s90
    %p96 = scmp.eq.s32.totalorder %s9, 0
    %p97 = por %p95, %p96
    %p98 = scmp.ne.s32.totalorder %s87, %s90
    %p99 = scmp.eq.s32.totalorder %s14, 3
    %p100 = por %p98, %p99
    %p101 = scmp.ne.s32.totalorder %s90, %s91
    %p102 = scmp.eq.s32.totalorder %s14, 0
    %p103 = por %p101, %p102
    %p104 = scmp.ne.s32.totalorder %s90, %s91
    %p105 = scmp.eq.s32.totalorder %s15, 3
    %p106 = por %p104, %p105
    %p108 = scmp.ne.s32.totalorder %s91, %s107
    %p109 = scmp.eq.s32.totalorder %s15, 0
    %p110 = por %p108, %p109
    %p111 = scmp.le.s32.totalorder 1, %s9
    %p112 = scmp.lt.s32.totalorder %s9, 5
    %p113 = pnand %p111, %p112
    %p114 = pneg %p113
    // Predicated region
    $region9: #{net_forward.5} parent=5 // pred_check
      _
    $region10: #{net_forward.5} parent=5 // pred_check_branch
      %116 = sbr.rel (%p113) target = $region12
    $region11: #{net_forward.5} parent=5 // pred_region
      %s117 = ssub.s32 %s9, 1
      // Predicated region
      $region13: #{net_forward.5} parent=11 // pred_check
        %p118 = pneg %p56
      $region14: #{net_forward.5} parent=11 // pred_check_branch
        %120 = sbr.rel (%p118) target = $region16
      $region15: #{net_forward.5} parent=11 // pred_region
        _
      $region16: #{net_forward.5} parent=11 // pred_fallthru
        _
      // Predicated region
      $region17: #{net_forward.5} parent=11 // pred_check
        %p121 = pneg %p77
      $region18: #{net_forward.5} parent=11 // pred_check_branch
        %123 = sbr.rel (%p121) target = $region20
      $region19: #{net_forward.5} parent=11 // pred_region
        _
      $region20: #{net_forward.5} parent=11 // pred_fallthru
        _
    $region12: #{net_forward.5} parent=5 // pred_fallthru
      _
    %p124 = scmp.lt.s32.totalorder %s9, 4
    // Predicated region
    $region21: #{net_forward.5} parent=5 // pred_check
      %p125 = pneg %p124
    $region22: #{net_forward.5} parent=5 // pred_check_branch
      %127 = sbr.rel (%p125) target = $region24
    $region23: #{net_forward.5} parent=5 // pred_region
      // Predicated region
      $region25: #{net_forward.5} parent=23 // pred_check
        %p128 = pneg %p29
      $region26: #{net_forward.5} parent=23 // pred_check_branch
        %130 = sbr.rel (%p128) target = $region28
      $region27: #{net_forward.5} parent=23 // pred_region
        %s131 = smul.u32 49, %s9
        %p132 = scmp.lt.s32.totalorder %s131, 195
        %s133 = scalar_select %p132, %s131, 195
        %s134 = smul.addr %s133, 8
        %s135 = scalar_lea.vmem %s0, %s134
        %s136 = smul.u32 49, %s9
      $region28: #{net_forward.5} parent=23 // pred_fallthru
        _
    $region24: #{net_forward.5} parent=5 // pred_fallthru
      _
    %p137 = scmp.le.s32.totalorder 1, %s9
    %p138 = scmp.lt.s32.totalorder %s9, 5
    %p139 = pnand %p137, %p138
    %p140 = pneg %p139
    // Predicated region
    $region29: #{net_forward.5} parent=5 // pred_check
      _
    $region30: #{net_forward.5} parent=5 // pred_check_branch
      %142 = sbr.rel (%p139) target = $region32
    $region31: #{net_forward.5} parent=5 // pred_region
      %s143 = ssub.s32 %s9, 1
      %s144 = smul.u32 49, %s14
      %p145 = scmp.lt.s32.totalorder %s144, 195
      %s146 = scalar_select %p145, %s144, 195
      %s147 = smul.addr %s146, 8
      %s148 = scalar_lea.vmem %s0, %s147
      %p149 = pneg %p35
      %p150 = pneg %p32
      %p151 = pneg %p56
      %p152 = pneg %p53
      %p153 = pneg %p77
      %p154 = pneg %p74
      %p155 = pneg %p103
      %p156 = pneg %p100
      %s157 = smul.u32 49, %s14
      %p158 = scmp.lt.s32.totalorder %s157, 195
      %s159 = scalar_select %p158, %s157, 195
      %s160 = smul.addr %s159, 8
      %s161 = scalar_lea.vmem %s3, %s160
      %s162 = smul.u32 49, %s14
      %p163 = scmp.lt.s32.totalorder %s162, 195
      %s164 = scalar_select %p163, %s162, 195
      %s165 = smul.addr %s164, 8
      %s166 = scalar_lea.vmem %s0, %s165
      %s167 = smul.u32 49, %s14
      %s168 = smul.u32 49, %s14
      %p169 = scmp.lt.s32.totalorder %s168, 195
      %s170 = scalar_select %p169, %s168, 195
      %s171 = smul.addr %s170, 8
      %s172 = scalar_lea.vmem %s3, %s171
      %s173 = smul.u32 49, %s14
      %v174 = vld [vmem:[%s166] sm:$0xff]
      %v175 = vld [vmem:[%s166 + $0x8] sm:$0xff]
      %v176 = vld [vmem:[%s166 + $0x10] sm:$0xff]
      %v177 = vld [vmem:[%s166 + $0x18] sm:$0xff]
      %v178 = vld [vmem:[%s166 + $0x20] sm:$0xff]
      %v179 = vld [vmem:[%s166 + $0x28] sm:$0xff]
      %v180 = vld [vmem:[%s166 + $0x30] sm:$0xff]
      %v181 = vld [vmem:[%s166 + $0x38] sm:$0xff]
      %v182 = vld [vmem:[%s166 + $0x40] sm:$0xff]
      %v183 = vld [vmem:[%s166 + $0x48] sm:$0xff]
      %v184 = vld [vmem:[%s166 + $0x50] sm:$0xff]
      %v185 = vld [vmem:[%s166 + $0x58] sm:$0xff]
      %v186 = vld [vmem:[%s166 + $0x60] sm:$0xff]
      %v187 = vld [vmem:[%s166 + $0x68] sm:$0xff]
      %v188 = vld [vmem:[%s166 + $0x70] sm:$0xff]
      %v189 = vld [vmem:[%s166 + $0x78] sm:$0xff]
      %v190 = vld [vmem:[%s166 + $0x80] sm:$0xff]
      %v191 = vld [vmem:[%s166 + $0x88] sm:$0xff]
      %v192 = vld [vmem:[%s166 + $0x90] sm:$0xff]
      %v193 = vld [vmem:[%s166 + $0x98] sm:$0xff]
      %v194 = vld [vmem:[%s166 + $0xa0] sm:$0xff]
      %v195 = vld [vmem:[%s166 + $0xa8] sm:$0xff]
      %v196 = vld [vmem:[%s166 + $0xb0] sm:$0xff]
      %v197 = vld [vmem:[%s166 + $0xb8] sm:$0xff]
      %v198 = vld [vmem:[%s166 + $0xc0] sm:$0xff]
      %v199 = vld [vmem:[%s166 + $0xc8] sm:$0xff]
      %v200 = vld [vmem:[%s166 + $0xd0] sm:$0xff]
      %v201 = vld [vmem:[%s166 + $0xd8] sm:$0xff]
      %v202 = vld [vmem:[%s166 + $0xe0] sm:$0xff]
      %v203 = vld [vmem:[%s166 + $0xe8] sm:$0xff]
      %v204 = vld [vmem:[%s166 + $0xf0] sm:$0xff]
      %v205 = vld [vmem:[%s166 + $0xf8] sm:$0xff]
      %v206 = vld [vmem:[%s166 + $0x100] sm:$0xff]
      %v207 = vld [vmem:[%s166 + $0x108] sm:$0xff]
      %v208 = vld [vmem:[%s166 + $0x110] sm:$0xff]
      %v209 = vld [vmem:[%s166 + $0x118] sm:$0xff]
      %v210 = vld [vmem:[%s166 + $0x120] sm:$0xff]
      %v211 = vld [vmem:[%s166 + $0x128] sm:$0xff]
      %v212 = vld [vmem:[%s166 + $0x130] sm:$0xff]
      %v213 = vld [vmem:[%s166 + $0x138] sm:$0xff]
      %v214 = vld [vmem:[%s166 + $0x140] sm:$0xff]
      %v215 = vld [vmem:[%s166 + $0x148] sm:$0xff]
      %v216 = vld [vmem:[%s166 + $0x150] sm:$0xff]
      %v217 = vld [vmem:[%s166 + $0x158] sm:$0xff]
      %v218 = vld [vmem:[%s166 + $0x160] sm:$0xff]
      %v219 = vld [vmem:[%s166 + $0x168] sm:$0xff]
      %v220 = vld [vmem:[%s166 + $0x170] sm:$0xff]
      %v221 = vld [vmem:[%s166 + $0x178] sm:$0xff]
      %v222 = vld [vmem:[%s166 + $0x180] sm:$0xff]
      %v223 = vld [vmem:[%s1] sm:$0xff]
      %v224 = vld [vmem:[%s1 + $0x8] sm:$0xff]
      %v225 = vld [vmem:[%s1 + $0x10] sm:$0xff]
      %v226 = vld [vmem:[%s1 + $0x18] sm:$0xff]
      %v227 = vld [vmem:[%s1 + $0x20] sm:$0xff]
      %v228 = vld [vmem:[%s1 + $0x28] sm:$0xff]
      %v229 = vld [vmem:[%s1 + $0x30] sm:$0xff]
      %v230 = vld [vmem:[%s1 + $0x38] sm:$0xff]
      %v231 = vld [vmem:[%s1 + $0x40] sm:$0xff]
      %v232 = vld [vmem:[%s1 + $0x48] sm:$0x7]
      %v233 = vld [vmem:[%s2] sm:$0x1]
      %v235 = vlaneseq
      %v236 = vshrl.u32 %v235, 7
      %v237 = vsub.s32 0, %v236
      %v238 = vrot.slane %v233, %v237
      %vm240 = vcmask 613376
      %v242 = vsel %vm240, %v174, 0
      %v245 = vsel %vm240, %v175, 0
      %v248 = vsel %vm240, %v176, 0
      %v251 = vsel %vm240, %v177, 0
      %v254 = vsel %vm240, %v178, 0
      %v257 = vsel %vm240, %v179, 0
      %v260 = vsel %vm240, %v180, 0
      %v263 = vsel %vm240, %v181, 0
      %v266 = vsel %vm240, %v182, 0
      %v269 = vsel %vm240, %v183, 0
      %v272 = vsel %vm240, %v184, 0
      %v275 = vsel %vm240, %v185, 0
      %v278 = vsel %vm240, %v186, 0
      %v281 = vsel %vm240, %v187, 0
      %v284 = vsel %vm240, %v188, 0
      %v287 = vsel %vm240, %v189, 0
      %v290 = vsel %vm240, %v190, 0
      %v293 = vsel %vm240, %v191, 0
      %v296 = vsel %vm240, %v192, 0
      %v299 = vsel %vm240, %v193, 0
      %v302 = vsel %vm240, %v194, 0
      %v305 = vsel %vm240, %v195, 0
      %v308 = vsel %vm240, %v196, 0
      %v311 = vsel %vm240, %v197, 0
      %v314 = vsel %vm240, %v198, 0
      %v317 = vsel %vm240, %v199, 0
      %v320 = vsel %vm240, %v200, 0
      %v323 = vsel %vm240, %v201, 0
      %v326 = vsel %vm240, %v202, 0
      %v329 = vsel %vm240, %v203, 0
      %v332 = vsel %vm240, %v204, 0
      %v335 = vsel %vm240, %v205, 0
      %v338 = vsel %vm240, %v206, 0
      %v341 = vsel %vm240, %v207, 0
      %v344 = vsel %vm240, %v208, 0
      %v347 = vsel %vm240, %v209, 0
      %v350 = vsel %vm240, %v210, 0
      %v353 = vsel %vm240, %v211, 0
      %v356 = vsel %vm240, %v212, 0
      %v359 = vsel %vm240, %v213, 0
      %v362 = vsel %vm240, %v214, 0
      %v365 = vsel %vm240, %v215, 0
      %v368 = vsel %vm240, %v216, 0
      %v371 = vsel %vm240, %v217, 0
      %v374 = vsel %vm240, %v218, 0
      %v377 = vsel %vm240, %v219, 0
      %v380 = vsel %vm240, %v220, 0
      %v383 = vsel %vm240, %v221, 0
      %v386 = vsel %vm240, %v222, 0
      %vm388 = vcmask 1042432
      %v390 = vsel %vm388, %v232, 0
      %392 = vmatprep.subr.mxu0 0.0
      %393 = vmatpush1.msra.mxu0 %v223
      %394 = vmatprep.subr.mxu0 0.0
      %395 = vmatpush1.msra.mxu0 %v224
      %396 = vmatprep.subr.mxu0 0.0
      %397 = vmatpush1.msra.mxu0 %v225
      %398 = vmatprep.subr.mxu0 0.0
      %399 = vmatpush1.msra.mxu0 %v226
      %400 = vmatprep.subr.mxu0 0.0
      %401 = vmatpush1.msra.mxu0 %v227
      %402 = vmatprep.subr.mxu0 0.0
      %403 = vmatpush1.msra.mxu0 %v228
      %404 = vmatprep.subr.mxu0 0.0
      %405 = vmatpush1.msra.mxu0 %v229
      %406 = vmatprep.subr.mxu0 0.0
      %407 = vmatpush1.msra.mxu0 %v230
      %408 = vmatprep.subr.mxu0 0.0
      %409 = vmatpush1.msra.mxu0 %v231
      %410 = vmatprep.subr.mxu0 0.0
      %411 = vmatpush1.msra.mxu0 %v390
      %412 = vmatprep.subr.mxu0 0.0
      %413 = vmatpush1.msra.mxu0 0.0
      %414 = vmatprep.subr.mxu0 0.0
      %415 = vmatpush1.msra.mxu0 0.0
      %416 = vmatprep.subr.mxu0 0.0
      %417 = vmatpush1.msra.mxu0 0.0
      %418 = vmatprep.subr.mxu0 0.0
      %419 = vmatpush1.msra.mxu0 0.0
      %420 = vmatprep.subr.mxu0 0.0
      %421 = vmatpush1.msra.mxu0 0.0
      %422 = vmatprep.subr.mxu0 0.0
      %423 = vmatpush1.msra.mxu0 0.0
      %424 = vmatprep.subr.mxu0 0.0
      %425 = vmatpush1.msra.mxu0 0.0
      %426 = vmatprep.subr.mxu0 0.0
      %427 = vmatpush1.msra.mxu0 0.0
      %428 = vmatprep.subr.mxu0 0.0
      %429 = vmatpush1.msra.mxu0 0.0
      %430 = vmatprep.subr.mxu0 0.0
      %431 = vmatpush1.msra.mxu0 0.0
      %432 = vmatprep.subr.mxu0 0.0
      %433 = vmatpush1.msra.mxu0 0.0
      %434 = vmatprep.subr.mxu0 0.0
      %435 = vmatpush1.msra.mxu0 0.0
      %436 = vmatprep.subr.mxu0 0.0
      %437 = vmatpush1.msra.mxu0 0.0
      %438 = vmatprep.subr.mxu0 0.0
      %439 = vmatpush1.msra.mxu0 0.0
      %440 = vmatprep.subr.mxu0 0.0
      %441 = vmatpush1.msra.mxu0 0.0
      %442 = vmatprep.subr.mxu0 0.0
      %443 = vmatpush1.msra.mxu0 0.0
      %444 = vmatprep.subr.mxu0 0.0
      %445 = vmatpush1.msra.mxu0 0.0
      %446 = vmatprep.subr.mxu0 0.0
      %447 = vmatpush1.msra.mxu0 0.0
      %448 = vmatprep.subr.mxu0 0.0
      %449 = vmatpush1.msra.mxu0 0.0
      %450 = vmatprep.subr.mxu0 0.0
      %451 = vmatpush1.msra.mxu0 0.0
      %452 = vmatprep.subr.mxu0 0.0
      %453 = vmatpush1.msra.mxu0 0.0
      %454 = vmatprep.subr.mxu0 0.0
      %455 = vmatpush1.msra.mxu0 0.0
      %456 = vmatprep.mubr.f32.mxu0 0.0
      %457 = vmatmul.mubr.f32.gmra.mrb[0].mxu0 %v242
      %v458 = vpop.f32.mrb[0].mxu0
      %v459 = vadd.f32 %v238, %v458
      %v460 = vpop.f32.mrb[0].mxu0
      %461 = vmatprep.mubr.f32.mxu0 0.0
      %462 = vmatmul.mubr.f32.gmra.mrb[0].mxu0 %v245
      %v463 = vpop.f32.mrb[0].mxu0
      %v464 = vadd.f32 %v238, %v463
      %v465 = vpop.f32.mrb[0].mxu0
      %466 = vmatprep.mubr.f32.mxu0 0.0
      %467 = vmatmul.mubr.f32.gmra.mrb[0].mxu0 %v248
      %v468 = vpop.f32.mrb[0].mxu0
      %v469 = vadd.f32 %v238, %v468
      %v470 = vpop.f32.mrb[0].mxu0
      %471 = vmatprep.mubr.f32.mxu0 0.0
      %472 = vmatmul.mubr.f32.gmra.mrb[0].mxu0 %v251
      %v473 = vpop.f32.mrb[0].mxu0
      %v474 = vadd.f32 %v238, %v473
      %v475 = vpop.f32.mrb[0].mxu0
      %476 = vmatprep.mubr.f32.mxu0 0.0
      %477 = vmatmul.mubr.f32.gmra.mrb[0].mxu0 %v254
      %v478 = vpop.f32.mrb[0].mxu0
      %v479 = vadd.f32 %v238, %v478
      %v480 = vpop.f32.mrb[0].mxu0
      %481 = vmatprep.mubr.f32.mxu0 0.0
      %482 = vmatmul.mubr.f32.gmra.mrb[0].mxu0 %v257
      %v483 = vpop.f32.mrb[0].mxu0
      %v484 = vadd.f32 %v238, %v483
      %v485 = vpop.f32.mrb[0].mxu0
      %486 = vmatprep.mubr.f32.mxu0 0.0
      %487 = vmatmul.mubr.f32.gmra.mrb[0].mxu0 %v260
      %v488 = vpop.f32.mrb[0].mxu0
      %v489 = vadd.f32 %v238, %v488
      %v490 = vpop.f32.mrb[0].mxu0
      %491 = vmatprep.mubr.f32.mxu0 0.0
      %492 = vmatmul.mubr.f32.gmra.mrb[0].mxu0 %v263
      %v493 = vpop.f32.mrb[0].mxu0
      %v494 = vadd.f32 %v238, %v493
      %v495 = vpop.f32.mrb[0].mxu0
      %496 = vmatprep.mubr.f32.mxu0 0.0
      %497 = vmatmul.mubr.f32.gmra.mrb[0].mxu0 %v266
      %v498 = vpop.f32.mrb[0].mxu0
      %v499 = vadd.f32 %v238, %v498
      %v500 = vpop.f32.mrb[0].mxu0
      %501 = vmatprep.mubr.f32.mxu0 0.0
      %502 = vmatmul.mubr.f32.gmra.mrb[0].mxu0 %v269
      %v503 = vpop.f32.mrb[0].mxu0
      %v504 = vadd.f32 %v238, %v503
      %v505 = vpop.f32.mrb[0].mxu0
      %506 = vmatprep.mubr.f32.mxu0 0.0
      %507 = vmatmul.mubr.f32.gmra.mrb[0].mxu0 %v272
      %v508 = vpop.f32.mrb[0].mxu0
      %v509 = vadd.f32 %v238, %v508
      %v510 = vpop.f32.mrb[0].mxu0
      %511 = vmatprep.mubr.f32.mxu0 0.0
      %512 = vmatmul.mubr.f32.gmra.mrb[0].mxu0 %v275
      %v513 = vpop.f32.mrb[0].mxu0
      %v514 = vadd.f32 %v238, %v513
      %v515 = vpop.f32.mrb[0].mxu0
      %516 = vmatprep.mubr.f32.mxu0 0.0
      %517 = vmatmul.mubr.f32.gmra.mrb[0].mxu0 %v278
      %v518 = vpop.f32.mrb[0].mxu0
      %v519 = vadd.f32 %v238, %v518
      %v520 = vpop.f32.mrb[0].mxu0
      %521 = vmatprep.mubr.f32.mxu0 0.0
      %522 = vmatmul.mubr.f32.gmra.mrb[0].mxu0 %v281
      %v523 = vpop.f32.mrb[0].mxu0
      %v524 = vadd.f32 %v238, %v523
      %v525 = vpop.f32.mrb[0].mxu0
      %526 = vmatprep.mubr.f32.mxu0 0.0
      %527 = vmatmul.mubr.f32.gmra.mrb[0].mxu0 %v284
      %v528 = vpop.f32.mrb[0].mxu0
      %v529 = vadd.f32 %v238, %v528
      %v530 = vpop.f32.mrb[0].mxu0
      %531 = vmatprep.mubr.f32.mxu0 0.0
      %532 = vmatmul.mubr.f32.gmra.mrb[0].mxu0 %v287
      %v533 = vpop.f32.mrb[0].mxu0
      %v534 = vadd.f32 %v238, %v533
      %v535 = vpop.f32.mrb[0].mxu0
      %536 = vmatprep.mubr.f32.mxu0 0.0
      %537 = vmatmul.mubr.f32.gmra.mrb[0].mxu0 %v290
      %v538 = vpop.f32.mrb[0].mxu0
      %v539 = vadd.f32 %v238, %v538
      %v540 = vpop.f32.mrb[0].mxu0
      %541 = vmatprep.mubr.f32.mxu0 0.0
      %542 = vmatmul.mubr.f32.gmra.mrb[0].mxu0 %v293
      %v543 = vpop.f32.mrb[0].mxu0
      %v544 = vadd.f32 %v238, %v543
      %v545 = vpop.f32.mrb[0].mxu0
      %546 = vmatprep.mubr.f32.mxu0 0.0
      %547 = vmatmul.mubr.f32.gmra.mrb[0].mxu0 %v296
      %v548 = vpop.f32.mrb[0].mxu0
      %v549 = vadd.f32 %v238, %v548
      %v550 = vpop.f32.mrb[0].mxu0
      %551 = vmatprep.mubr.f32.mxu0 0.0
      %552 = vmatmul.mubr.f32.gmra.mrb[0].mxu0 %v299
      %v553 = vpop.f32.mrb[0].mxu0
      %v554 = vadd.f32 %v238, %v553
      %v555 = vpop.f32.mrb[0].mxu0
      %556 = vmatprep.mubr.f32.mxu0 0.0
      %557 = vmatmul.mubr.f32.gmra.mrb[0].mxu0 %v302
      %v558 = vpop.f32.mrb[0].mxu0
      %v559 = vadd.f32 %v238, %v558
      %v560 = vpop.f32.mrb[0].mxu0
      %561 = vmatprep.mubr.f32.mxu0 0.0
      %562 = vmatmul.mubr.f32.gmra.mrb[0].mxu0 %v305
      %v563 = vpop.f32.mrb[0].mxu0
      %v564 = vadd.f32 %v238, %v563
      %v565 = vpop.f32.mrb[0].mxu0
      %566 = vmatprep.mubr.f32.mxu0 0.0
      %567 = vmatmul.mubr.f32.gmra.mrb[0].mxu0 %v308
      %v568 = vpop.f32.mrb[0].mxu0
      %v569 = vadd.f32 %v238, %v568
      %v570 = vpop.f32.mrb[0].mxu0
      %571 = vmatprep.mubr.f32.mxu0 0.0
      %572 = vmatmul.mubr.f32.gmra.mrb[0].mxu0 %v311
      %v573 = vpop.f32.mrb[0].mxu0
      %v574 = vadd.f32 %v238, %v573
      %v575 = vpop.f32.mrb[0].mxu0
      %576 = vmatprep.mubr.f32.mxu0 0.0
      %577 = vmatmul.mubr.f32.gmra.mrb[0].mxu0 %v314
      %v578 = vpop.f32.mrb[0].mxu0
      %v579 = vadd.f32 %v238, %v578
      %v580 = vpop.f32.mrb[0].mxu0
      %581 = vmatprep.mubr.f32.mxu0 0.0
      %582 = vmatmul.mubr.f32.gmra.mrb[0].mxu0 %v317
      %v583 = vpop.f32.mrb[0].mxu0
      %v584 = vadd.f32 %v238, %v583
      %v585 = vpop.f32.mrb[0].mxu0
      %586 = vmatprep.mubr.f32.mxu0 0.0
      %587 = vmatmul.mubr.f32.gmra.mrb[0].mxu0 %v320
      %v588 = vpop.f32.mrb[0].mxu0
      %v589 = vadd.f32 %v238, %v588
      %v590 = vpop.f32.mrb[0].mxu0
      %591 = vmatprep.mubr.f32.mxu0 0.0
      %592 = vmatmul.mubr.f32.gmra.mrb[0].mxu0 %v323
      %v593 = vpop.f32.mrb[0].mxu0
      %v594 = vadd.f32 %v238, %v593
      %v595 = vpop.f32.mrb[0].mxu0
      %596 = vmatprep.mubr.f32.mxu0 0.0
      %597 = vmatmul.mubr.f32.gmra.mrb[0].mxu0 %v326
      %v598 = vpop.f32.mrb[0].mxu0
      %v599 = vadd.f32 %v238, %v598
      %v600 = vpop.f32.mrb[0].mxu0
      %601 = vmatprep.mubr.f32.mxu0 0.0
      %602 = vmatmul.mubr.f32.gmra.mrb[0].mxu0 %v329
      %v603 = vpop.f32.mrb[0].mxu0
      %v604 = vadd.f32 %v238, %v603
      %v605 = vpop.f32.mrb[0].mxu0
      %606 = vmatprep.mubr.f32.mxu0 0.0
      %607 = vmatmul.mubr.f32.gmra.mrb[0].mxu0 %v332
      %v608 = vpop.f32.mrb[0].mxu0
      %v609 = vadd.f32 %v238, %v608
      %v610 = vpop.f32.mrb[0].mxu0
      %611 = vmatprep.mubr.f32.mxu0 0.0
      %612 = vmatmul.mubr.f32.gmra.mrb[0].mxu0 %v335
      %v613 = vpop.f32.mrb[0].mxu0
      %v614 = vadd.f32 %v238, %v613
      %v615 = vpop.f32.mrb[0].mxu0
      %616 = vmatprep.mubr.f32.mxu0 0.0
      %617 = vmatmul.mubr.f32.gmra.mrb[0].mxu0 %v338
      %v618 = vpop.f32.mrb[0].mxu0
      %v619 = vadd.f32 %v238, %v618
      %v620 = vpop.f32.mrb[0].mxu0
      %621 = vmatprep.mubr.f32.mxu0 0.0
      %622 = vmatmul.mubr.f32.gmra.mrb[0].mxu0 %v341
      %v623 = vpop.f32.mrb[0].mxu0
      %v624 = vadd.f32 %v238, %v623
      %v625 = vpop.f32.mrb[0].mxu0
      %626 = vmatprep.mubr.f32.mxu0 0.0
      %627 = vmatmul.mubr.f32.gmra.mrb[0].mxu0 %v344
      %v628 = vpop.f32.mrb[0].mxu0
      %v629 = vadd.f32 %v238, %v628
      %v630 = vpop.f32.mrb[0].mxu0
      %631 = vmatprep.mubr.f32.mxu0 0.0
      %632 = vmatmul.mubr.f32.gmra.mrb[0].mxu0 %v347
      %v633 = vpop.f32.mrb[0].mxu0
      %v634 = vadd.f32 %v238, %v633
      %v635 = vpop.f32.mrb[0].mxu0
      %636 = vmatprep.mubr.f32.mxu0 0.0
      %637 = vmatmul.mubr.f32.gmra.mrb[0].mxu0 %v350
      %v638 = vpop.f32.mrb[0].mxu0
      %v639 = vadd.f32 %v238, %v638
      %v640 = vpop.f32.mrb[0].mxu0
      %641 = vmatprep.mubr.f32.mxu0 0.0
      %642 = vmatmul.mubr.f32.gmra.mrb[0].mxu0 %v353
      %v643 = vpop.f32.mrb[0].mxu0
      %v644 = vadd.f32 %v238, %v643
      %v645 = vpop.f32.mrb[0].mxu0
      %646 = vmatprep.mubr.f32.mxu0 0.0
      %647 = vmatmul.mubr.f32.gmra.mrb[0].mxu0 %v356
      %v648 = vpop.f32.mrb[0].mxu0
      %v649 = vadd.f32 %v238, %v648
      %v650 = vpop.f32.mrb[0].mxu0
      %651 = vmatprep.mubr.f32.mxu0 0.0
      %652 = vmatmul.mubr.f32.gmra.mrb[0].mxu0 %v359
      %v653 = vpop.f32.mrb[0].mxu0
      %v654 = vadd.f32 %v238, %v653
      %v655 = vpop.f32.mrb[0].mxu0
      %656 = vmatprep.mubr.f32.mxu0 0.0
      %657 = vmatmul.mubr.f32.gmra.mrb[0].mxu0 %v362
      %v658 = vpop.f32.mrb[0].mxu0
      %v659 = vadd.f32 %v238, %v658
      %v660 = vpop.f32.mrb[0].mxu0
      %661 = vmatprep.mubr.f32.mxu0 0.0
      %662 = vmatmul.mubr.f32.gmra.mrb[0].mxu0 %v365
      %v663 = vpop.f32.mrb[0].mxu0
      %v664 = vadd.f32 %v238, %v663
      %v665 = vpop.f32.mrb[0].mxu0
      %666 = vmatprep.mubr.f32.mxu0 0.0
      %667 = vmatmul.mubr.f32.gmra.mrb[0].mxu0 %v368
      %v668 = vpop.f32.mrb[0].mxu0
      %v669 = vadd.f32 %v238, %v668
      %v670 = vpop.f32.mrb[0].mxu0
      %671 = vmatprep.mubr.f32.mxu0 0.0
      %672 = vmatmul.mubr.f32.gmra.mrb[0].mxu0 %v371
      %v673 = vpop.f32.mrb[0].mxu0
      %v674 = vadd.f32 %v238, %v673
      %v675 = vpop.f32.mrb[0].mxu0
      %676 = vmatprep.mubr.f32.mxu0 0.0
      %677 = vmatmul.mubr.f32.gmra.mrb[0].mxu0 %v374
      %v678 = vpop.f32.mrb[0].mxu0
      %v679 = vadd.f32 %v238, %v678
      %v680 = vpop.f32.mrb[0].mxu0
      %681 = vmatprep.mubr.f32.mxu0 0.0
      %682 = vmatmul.mubr.f32.gmra.mrb[0].mxu0 %v377
      %v683 = vpop.f32.mrb[0].mxu0
      %v684 = vadd.f32 %v238, %v683
      %v685 = vpop.f32.mrb[0].mxu0
      %686 = vmatprep.mubr.f32.mxu0 0.0
      %687 = vmatmul.mubr.f32.gmra.mrb[0].mxu0 %v380
      %v688 = vpop.f32.mrb[0].mxu0
      %v689 = vadd.f32 %v238, %v688
      %v690 = vpop.f32.mrb[0].mxu0
      %691 = vmatprep.mubr.f32.mxu0 0.0
      %692 = vmatmul.mubr.f32.gmra.mrb[0].mxu0 %v383
      %v693 = vpop.f32.mrb[0].mxu0
      %v694 = vadd.f32 %v238, %v693
      %v695 = vpop.f32.mrb[0].mxu0
      %696 = vmatprep.mubr.f32.mxu0 0.0
      %697 = vmatmul.mubr.f32.gmra.mrb[0].mxu0 %v386
      %v698 = vpop.f32.mrb[0].mxu0
      %v699 = vadd.f32 %v238, %v698
      %v700 = vpop.f32.mrb[0].mxu0
      %701 = vdwg.mxu0
      %v702 = vmax.f32 %v459, 0.0
      %v703 = vmax.f32 %v464, 0.0
      %v704 = vmax.f32 %v469, 0.0
      %v705 = vmax.f32 %v474, 0.0
      %v706 = vmax.f32 %v479, 0.0
      %v707 = vmax.f32 %v484, 0.0
      %v708 = vmax.f32 %v489, 0.0
      %v709 = vmax.f32 %v494, 0.0
      %v710 = vmax.f32 %v499, 0.0
      %v711 = vmax.f32 %v504, 0.0
      %v712 = vmax.f32 %v509, 0.0
      %v713 = vmax.f32 %v514, 0.0
      %v714 = vmax.f32 %v519, 0.0
      %v715 = vmax.f32 %v524, 0.0
      %v716 = vmax.f32 %v529, 0.0
      %v717 = vmax.f32 %v534, 0.0
      %v718 = vmax.f32 %v539, 0.0
      %v719 = vmax.f32 %v544, 0.0
      %v720 = vmax.f32 %v549, 0.0
      %v721 = vmax.f32 %v554, 0.0
      %v722 = vmax.f32 %v559, 0.0
      %v723 = vmax.f32 %v564, 0.0
      %v724 = vmax.f32 %v569, 0.0
      %v725 = vmax.f32 %v574, 0.0
      %v726 = vmax.f32 %v579, 0.0
      %v727 = vmax.f32 %v584, 0.0
      %v728 = vmax.f32 %v589, 0.0
      %v729 = vmax.f32 %v594, 0.0
      %v730 = vmax.f32 %v599, 0.0
      %v731 = vmax.f32 %v604, 0.0
      %v732 = vmax.f32 %v609, 0.0
      %v733 = vmax.f32 %v614, 0.0
      %v734 = vmax.f32 %v619, 0.0
      %v735 = vmax.f32 %v624, 0.0
      %v736 = vmax.f32 %v629, 0.0
      %v737 = vmax.f32 %v634, 0.0
      %v738 = vmax.f32 %v639, 0.0
      %v739 = vmax.f32 %v644, 0.0
      %v740 = vmax.f32 %v649, 0.0
      %v741 = vmax.f32 %v654, 0.0
      %v742 = vmax.f32 %v659, 0.0
      %v743 = vmax.f32 %v664, 0.0
      %v744 = vmax.f32 %v669, 0.0
      %v745 = vmax.f32 %v674, 0.0
      %v746 = vmax.f32 %v679, 0.0
      %v747 = vmax.f32 %v684, 0.0
      %v748 = vmax.f32 %v689, 0.0
      %v749 = vmax.f32 %v694, 0.0
      %v750 = vmax.f32 %v699, 0.0
      %751 = vst [vmem:[%s172] sm:$0xff] %v702
      %752 = vst [vmem:[%s172 + $0x8] sm:$0xff] %v703
      %753 = vst [vmem:[%s172 + $0x10] sm:$0xff] %v704
      %754 = vst [vmem:[%s172 + $0x18] sm:$0xff] %v705
      %755 = vst [vmem:[%s172 + $0x20] sm:$0xff] %v706
      %756 = vst [vmem:[%s172 + $0x28] sm:$0xff] %v707
      %757 = vst [vmem:[%s172 + $0x30] sm:$0xff] %v708
      %758 = vst [vmem:[%s172 + $0x38] sm:$0xff] %v709
      %759 = vst [vmem:[%s172 + $0x40] sm:$0xff] %v710
      %760 = vst [vmem:[%s172 + $0x48] sm:$0xff] %v711
      %761 = vst [vmem:[%s172 + $0x50] sm:$0xff] %v712
      %762 = vst [vmem:[%s172 + $0x58] sm:$0xff] %v713
      %763 = vst [vmem:[%s172 + $0x60] sm:$0xff] %v714
      %764 = vst [vmem:[%s172 + $0x68] sm:$0xff] %v715
      %765 = vst [vmem:[%s172 + $0x70] sm:$0xff] %v716
      %766 = vst [vmem:[%s172 + $0x78] sm:$0xff] %v717
      %767 = vst [vmem:[%s172 + $0x80] sm:$0xff] %v718
      %768 = vst [vmem:[%s172 + $0x88] sm:$0xff] %v719
      %769 = vst [vmem:[%s172 + $0x90] sm:$0xff] %v720
      %770 = vst [vmem:[%s172 + $0x98] sm:$0xff] %v721
      %771 = vst [vmem:[%s172 + $0xa0] sm:$0xff] %v722
      %772 = vst [vmem:[%s172 + $0xa8] sm:$0xff] %v723
      %773 = vst [vmem:[%s172 + $0xb0] sm:$0xff] %v724
      %774 = vst [vmem:[%s172 + $0xb8] sm:$0xff] %v725
      %775 = vst [vmem:[%s172 + $0xc0] sm:$0xff] %v726
      %776 = vst [vmem:[%s172 + $0xc8] sm:$0xff] %v727
      %777 = vst [vmem:[%s172 + $0xd0] sm:$0xff] %v728
      %778 = vst [vmem:[%s172 + $0xd8] sm:$0xff] %v729
      %779 = vst [vmem:[%s172 + $0xe0] sm:$0xff] %v730
      %780 = vst [vmem:[%s172 + $0xe8] sm:$0xff] %v731
      %781 = vst [vmem:[%s172 + $0xf0] sm:$0xff] %v732
      %782 = vst [vmem:[%s172 + $0xf8] sm:$0xff] %v733
      %783 = vst [vmem:[%s172 + $0x100] sm:$0xff] %v734
      %784 = vst [vmem:[%s172 + $0x108] sm:$0xff] %v735
      %785 = vst [vmem:[%s172 + $0x110] sm:$0xff] %v736
      %786 = vst [vmem:[%s172 + $0x118] sm:$0xff] %v737
      %787 = vst [vmem:[%s172 + $0x120] sm:$0xff] %v738
      %788 = vst [vmem:[%s172 + $0x128] sm:$0xff] %v739
      %789 = vst [vmem:[%s172 + $0x130] sm:$0xff] %v740
      %790 = vst [vmem:[%s172 + $0x138] sm:$0xff] %v741
      %791 = vst [vmem:[%s172 + $0x140] sm:$0xff] %v742
      %792 = vst [vmem:[%s172 + $0x148] sm:$0xff] %v743
      %793 = vst [vmem:[%s172 + $0x150] sm:$0xff] %v744
      %794 = vst [vmem:[%s172 + $0x158] sm:$0xff] %v745
      %795 = vst [vmem:[%s172 + $0x160] sm:$0xff] %v746
      %796 = vst [vmem:[%s172 + $0x168] sm:$0xff] %v747
      %797 = vst [vmem:[%s172 + $0x170] sm:$0xff] %v748
      %798 = vst [vmem:[%s172 + $0x178] sm:$0xff] %v749
      %799 = vst [vmem:[%s172 + $0x180] sm:$0xff] %v750
      %s800 = smul.u32 49, %s14
      %p801 = scmp.lt.s32.totalorder %s800, 195
      %s802 = scalar_select %p801, %s800, 195
      %s803 = smul.addr %s802, 8
      %s804 = scalar_lea.vmem %s3, %s803
      // Predicated region
      $region33: #{net_forward.5} parent=31 // pred_check
        %p805 = pneg %p100
      $region34: #{net_forward.5} parent=31 // pred_check_branch
        %807 = sbr.rel (%p805) target = $region36
      $region35: #{net_forward.5} parent=31 // pred_region
        %s808 = smul.u32 49, %s14
      $region36: #{net_forward.5} parent=31 // pred_fallthru
        _
    $region32: #{net_forward.5} parent=5 // pred_fallthru
      _
    %p809 = scmp.le.s32.totalorder 2, %s9
    // Predicated region
    $region37: #{net_forward.5} parent=5 // pred_check
      %p810 = pneg %p809
    $region38: #{net_forward.5} parent=5 // pred_check_branch
      %812 = sbr.rel (%p810) target = $region40
    $region39: #{net_forward.5} parent=5 // pred_region
      %s813 = ssub.s32 %s9, 2
      // Predicated region
      $region41: #{net_forward.5} parent=39 // pred_check
        %p814 = pneg %p106
      $region42: #{net_forward.5} parent=39 // pred_check_branch
        %816 = sbr.rel (%p814) target = $region44
      $region43: #{net_forward.5} parent=39 // pred_region
        %s817 = smul.u32 49, %s15
        %p818 = scmp.lt.s32.totalorder %s817, 195
        %s819 = scalar_select %p818, %s817, 195
        %s820 = smul.addr %s819, 8
        %s821 = scalar_lea.vmem %s3, %s820
      $region44: #{net_forward.5} parent=39 // pred_fallthru
        _
    $region40: #{net_forward.5} parent=5 // pred_fallthru
      _
  $region6: #{net_forward.5} parent=0 // loop_footer
    %s13 = sadd.s32 1, %s9
  $region7: #{net_forward.5} parent=0 // loop_footer_branch
    %8 = sbr.rel target = $region3
  $region8: #{net_forward.5} parent=0 // loop_exit
    _

// kernel: net_forward.6
$region0: #{net_forward.6}
  #allocation0 [shape = 'u32[]', space=smem, size = 0x4, offset = 0x4, fixed_abs, tag = 'smem constant byte address 0x4 - core index']
  #allocation1 [shape = 'u32[144,128]{1,0:T(1,128)}', space=vmem, size = 0x12000, scoped, tag = 'internal scratch']
  %s0 = inlined_call_operand.vmem [shape: f32[28,2,14,256], index: 0, kind: input, shape index: {}]
  %s1 = inlined_call_operand.vmem [shape: f32[28,14,128], index: 1, kind: output, shape index: {}]
  %s2 = sld [smem:[#allocation0]]
  $region14: #{net_forward.6} parent=0
    _
  %s4 = ssub.s32 1, %s2
  %s5 = scalar_select 0, %s4, %s2
  // Predicated region
  $region2: #{net_forward.6} parent=0 // pred_check
    _
  $region3: #{net_forward.6} parent=0 // pred_check_branch
    %7 = sbr.rel (0) target = $region5
  $region4: #{net_forward.6} parent=0 // pred_region
    _
  $region5: #{net_forward.6} parent=0 // pred_fallthru
    _
  %v8 = vld [vmem:[%s0] sm:$0xff]
  %v9 = vld [vmem:[%s0 + $0x8] sm:$0xff]
  %v10 = vld [vmem:[%s0 + $0x10] sm:$0x3f]
  %v11 = vld [vmem:[%s0 + $0x18] sm:$0x3f]
  %v12 = vld [vmem:[%s0 + $0x20] sm:$0xff]
  %v13 = vld [vmem:[%s0 + $0x28] sm:$0xff]
  %v14 = vld [vmem:[%s0 + $0x30] sm:$0x3f]
  %v15 = vld [vmem:[%s0 + $0x38] sm:$0x3f]
  %v16 = vld [vmem:[%s0 + $0x40] sm:$0xff]
  %v17 = vld [vmem:[%s0 + $0x48] sm:$0xff]
  %v18 = vld [vmem:[%s0 + $0x50] sm:$0x3f]
  %v19 = vld [vmem:[%s0 + $0x58] sm:$0x3f]
  %v20 = vld [vmem:[%s0 + $0x60] sm:$0xff]
  %v21 = vld [vmem:[%s0 + $0x68] sm:$0xff]
  %v22 = vld [vmem:[%s0 + $0x70] sm:$0x3f]
  %v23 = vld [vmem:[%s0 + $0x78] sm:$0x3f]
  %v24 = vld [vmem:[%s0 + $0x80] sm:$0xff]
  %v25 = vld [vmem:[%s0 + $0x88] sm:$0xff]
  %v26 = vld [vmem:[%s0 + $0x90] sm:$0x3f]
  %v27 = vld [vmem:[%s0 + $0x98] sm:$0x3f]
  %v28 = vld [vmem:[%s0 + $0xa0] sm:$0xff]
  %v29 = vld [vmem:[%s0 + $0xa8] sm:$0xff]
  %v30 = vld [vmem:[%s0 + $0xb0] sm:$0x3f]
  %v31 = vld [vmem:[%s0 + $0xb8] sm:$0x3f]
  %v32 = vld [vmem:[%s0 + $0xc0] sm:$0xff]
  %v33 = vld [vmem:[%s0 + $0xc8] sm:$0xff]
  %v34 = vld [vmem:[%s0 + $0xd0] sm:$0x3f]
  %v35 = vld [vmem:[%s0 + $0xd8] sm:$0x3f]
  %v36 = vld [vmem:[%s0 + $0xe0] sm:$0xff]
  %v37 = vld [vmem:[%s0 + $0xe8] sm:$0xff]
  %v38 = vld [vmem:[%s0 + $0xf0] sm:$0x3f]
  %v39 = vld [vmem:[%s0 + $0xf8] sm:$0x3f]
  %v40 = vld [vmem:[%s0 + $0x100] sm:$0xff]
  %v41 = vld [vmem:[%s0 + $0x108] sm:$0xff]
  %v42 = vld [vmem:[%s0 + $0x110] sm:$0x3f]
  %v43 = vld [vmem:[%s0 + $0x118] sm:$0x3f]
  %v44 = vld [vmem:[%s0 + $0x120] sm:$0xff]
  %v45 = vld [vmem:[%s0 + $0x128] sm:$0xff]
  %v46 = vld [vmem:[%s0 + $0x130] sm:$0x3f]
  %v47 = vld [vmem:[%s0 + $0x138] sm:$0x3f]
  %v48 = vld [vmem:[%s0 + $0x140] sm:$0xff]
  %v49 = vld [vmem:[%s0 + $0x148] sm:$0xff]
  %v50 = vld [vmem:[%s0 + $0x150] sm:$0x3f]
  %v51 = vld [vmem:[%s0 + $0x158] sm:$0x3f]
  %v52 = vld [vmem:[%s0 + $0x160] sm:$0xff]
  %v53 = vld [vmem:[%s0 + $0x168] sm:$0xff]
  %v54 = vld [vmem:[%s0 + $0x170] sm:$0x3f]
  %v55 = vld [vmem:[%s0 + $0x178] sm:$0x3f]
  %v56 = vld [vmem:[%s0 + $0x180] sm:$0xff]
  %v57 = vld [vmem:[%s0 + $0x188] sm:$0xff]
  %v58 = vld [vmem:[%s0 + $0x190] sm:$0x3f]
  %v59 = vld [vmem:[%s0 + $0x198] sm:$0x3f]
  %v60 = vld [vmem:[%s0 + $0x1a0] sm:$0xff]
  %v61 = vld [vmem:[%s0 + $0x1a8] sm:$0xff]
  %v62 = vld [vmem:[%s0 + $0x1b0] sm:$0x3f]
  %v63 = vld [vmem:[%s0 + $0x1b8] sm:$0x3f]
  %v64 = vld [vmem:[%s0 + $0x1c0] sm:$0xff]
  %v65 = vld [vmem:[%s0 + $0x1c8] sm:$0xff]
  %v66 = vld [vmem:[%s0 + $0x1d0] sm:$0x3f]
  %v67 = vld [vmem:[%s0 + $0x1d8] sm:$0x3f]
  %v68 = vld [vmem:[%s0 + $0x1e0] sm:$0xff]
  %v69 = vld [vmem:[%s0 + $0x1e8] sm:$0xff]
  %v70 = vld [vmem:[%s0 + $0x1f0] sm:$0x3f]
  %v71 = vld [vmem:[%s0 + $0x1f8] sm:$0x3f]
  %v72 = vld [vmem:[%s0 + $0x200] sm:$0xff]
  %v73 = vld [vmem:[%s0 + $0x208] sm:$0xff]
  %v74 = vld [vmem:[%s0 + $0x210] sm:$0x3f]
  %v75 = vld [vmem:[%s0 + $0x218] sm:$0x3f]
  %v76 = vld [vmem:[%s0 + $0x220] sm:$0xff]
  %v77 = vld [vmem:[%s0 + $0x228] sm:$0xff]
  %v78 = vld [vmem:[%s0 + $0x230] sm:$0x3f]
  %v79 = vld [vmem:[%s0 + $0x238] sm:$0x3f]
  %v80 = vld [vmem:[%s0 + $0x240] sm:$0xff]
  %v81 = vld [vmem:[%s0 + $0x248] sm:$0xff]
  %v82 = vld [vmem:[%s0 + $0x250] sm:$0x3f]
  %v83 = vld [vmem:[%s0 + $0x258] sm:$0x3f]
  %v84 = vld [vmem:[%s0 + $0x260] sm:$0xff]
  %v85 = vld [vmem:[%s0 + $0x268] sm:$0xff]
  %v86 = vld [vmem:[%s0 + $0x270] sm:$0x3f]
  %v87 = vld [vmem:[%s0 + $0x278] sm:$0x3f]
  %v88 = vld [vmem:[%s0 + $0x280] sm:$0xff]
  %v89 = vld [vmem:[%s0 + $0x288] sm:$0xff]
  %v90 = vld [vmem:[%s0 + $0x290] sm:$0x3f]
  %v91 = vld [vmem:[%s0 + $0x298] sm:$0x3f]
  %v92 = vld [vmem:[%s0 + $0x2a0] sm:$0xff]
  %v93 = vld [vmem:[%s0 + $0x2a8] sm:$0xff]
  %v94 = vld [vmem:[%s0 + $0x2b0] sm:$0x3f]
  %v95 = vld [vmem:[%s0 + $0x2b8] sm:$0x3f]
  %v96 = vld [vmem:[%s0 + $0x2c0] sm:$0xff]
  %v97 = vld [vmem:[%s0 + $0x2c8] sm:$0xff]
  %v98 = vld [vmem:[%s0 + $0x2d0] sm:$0x3f]
  %v99 = vld [vmem:[%s0 + $0x2d8] sm:$0x3f]
  %v100 = vld [vmem:[%s0 + $0x2e0] sm:$0xff]
  %v101 = vld [vmem:[%s0 + $0x2e8] sm:$0xff]
  %v102 = vld [vmem:[%s0 + $0x2f0] sm:$0x3f]
  %v103 = vld [vmem:[%s0 + $0x2f8] sm:$0x3f]
  %v104 = vld [vmem:[%s0 + $0x300] sm:$0xff]
  %v105 = vld [vmem:[%s0 + $0x308] sm:$0xff]
  %v106 = vld [vmem:[%s0 + $0x310] sm:$0x3f]
  %v107 = vld [vmem:[%s0 + $0x318] sm:$0x3f]
  %v108 = vld [vmem:[%s0 + $0x320] sm:$0xff]
  %v109 = vld [vmem:[%s0 + $0x328] sm:$0xff]
  %v110 = vld [vmem:[%s0 + $0x330] sm:$0x3f]
  %v111 = vld [vmem:[%s0 + $0x338] sm:$0x3f]
  %v112 = vld [vmem:[%s0 + $0x340] sm:$0xff]
  %v113 = vld [vmem:[%s0 + $0x348] sm:$0xff]
  %v114 = vld [vmem:[%s0 + $0x350] sm:$0x3f]
  %v115 = vld [vmem:[%s0 + $0x358] sm:$0x3f]
  %v116 = vld [vmem:[%s0 + $0x360] sm:$0xff]
  %v117 = vld [vmem:[%s0 + $0x368] sm:$0xff]
  %v118 = vld [vmem:[%s0 + $0x370] sm:$0x3f]
  %v119 = vld [vmem:[%s0 + $0x378] sm:$0x3f]
  %v120 = vld [vmem:[%s0 + $0x380] sm:$0xff]
  %v121 = vld [vmem:[%s0 + $0x388] sm:$0xff]
  %v122 = vld [vmem:[%s0 + $0x390] sm:$0x3f]
  %v123 = vld [vmem:[%s0 + $0x398] sm:$0x3f]
  %v124 = vld [vmem:[%s0 + $0x3a0] sm:$0xff]
  %v125 = vld [vmem:[%s0 + $0x3a8] sm:$0xff]
  %v126 = vld [vmem:[%s0 + $0x3b0] sm:$0x3f]
  %v127 = vld [vmem:[%s0 + $0x3b8] sm:$0x3f]
  %v128 = vld [vmem:[%s0 + $0x3c0] sm:$0xff]
  %v129 = vld [vmem:[%s0 + $0x3c8] sm:$0xff]
  %v130 = vld [vmem:[%s0 + $0x3d0] sm:$0x3f]
  %v131 = vld [vmem:[%s0 + $0x3d8] sm:$0x3f]
  %v132 = vld [vmem:[%s0 + $0x3e0] sm:$0xff]
  %v133 = vld [vmem:[%s0 + $0x3e8] sm:$0xff]
  %v134 = vld [vmem:[%s0 + $0x3f0] sm:$0x3f]
  %v135 = vld [vmem:[%s0 + $0x3f8] sm:$0x3f]
  %v136 = vld [vmem:[%s0 + $0x400] sm:$0xff]
  %v137 = vld [vmem:[%s0 + $0x408] sm:$0xff]
  %v138 = vld [vmem:[%s0 + $0x410] sm:$0x3f]
  %v139 = vld [vmem:[%s0 + $0x418] sm:$0x3f]
  %v140 = vld [vmem:[%s0 + $0x420] sm:$0xff]
  %v141 = vld [vmem:[%s0 + $0x428] sm:$0xff]
  %v142 = vld [vmem:[%s0 + $0x430] sm:$0x3f]
  %v143 = vld [vmem:[%s0 + $0x438] sm:$0x3f]
  %v144 = vld [vmem:[%s0 + $0x440] sm:$0xff]
  %v145 = vld [vmem:[%s0 + $0x448] sm:$0xff]
  %v146 = vld [vmem:[%s0 + $0x450] sm:$0x3f]
  %v147 = vld [vmem:[%s0 + $0x458] sm:$0x3f]
  %v148 = vld [vmem:[%s0 + $0x460] sm:$0xff]
  %v149 = vld [vmem:[%s0 + $0x468] sm:$0xff]
  %v150 = vld [vmem:[%s0 + $0x470] sm:$0x3f]
  %v151 = vld [vmem:[%s0 + $0x478] sm:$0x3f]
  %v152 = vld [vmem:[%s0 + $0x480] sm:$0xff]
  %v153 = vld [vmem:[%s0 + $0x488] sm:$0xff]
  %v154 = vld [vmem:[%s0 + $0x490] sm:$0x3f]
  %v155 = vld [vmem:[%s0 + $0x498] sm:$0x3f]
  %v156 = vld [vmem:[%s0 + $0x4a0] sm:$0xff]
  %v157 = vld [vmem:[%s0 + $0x4a8] sm:$0xff]
  %v158 = vld [vmem:[%s0 + $0x4b0] sm:$0x3f]
  %v159 = vld [vmem:[%s0 + $0x4b8] sm:$0x3f]
  %v160 = vld [vmem:[%s0 + $0x4c0] sm:$0xff]
  %v161 = vld [vmem:[%s0 + $0x4c8] sm:$0xff]
  %v162 = vld [vmem:[%s0 + $0x4d0] sm:$0x3f]
  %v163 = vld [vmem:[%s0 + $0x4d8] sm:$0x3f]
  %v164 = vld [vmem:[%s0 + $0x4e0] sm:$0xff]
  %v165 = vld [vmem:[%s0 + $0x4e8] sm:$0xff]
  %v166 = vld [vmem:[%s0 + $0x4f0] sm:$0x3f]
  %v167 = vld [vmem:[%s0 + $0x4f8] sm:$0x3f]
  %v168 = vld [vmem:[%s0 + $0x500] sm:$0xff]
  %v169 = vld [vmem:[%s0 + $0x508] sm:$0xff]
  %v170 = vld [vmem:[%s0 + $0x510] sm:$0x3f]
  %v171 = vld [vmem:[%s0 + $0x518] sm:$0x3f]
  %v172 = vld [vmem:[%s0 + $0x520] sm:$0xff]
  %v173 = vld [vmem:[%s0 + $0x528] sm:$0xff]
  %v174 = vld [vmem:[%s0 + $0x530] sm:$0x3f]
  %v175 = vld [vmem:[%s0 + $0x538] sm:$0x3f]
  %v176 = vld [vmem:[%s0 + $0x540] sm:$0xff]
  %v177 = vld [vmem:[%s0 + $0x548] sm:$0xff]
  %v178 = vld [vmem:[%s0 + $0x550] sm:$0x3f]
  %v179 = vld [vmem:[%s0 + $0x558] sm:$0x3f]
  %v180 = vld [vmem:[%s0 + $0x560] sm:$0xff]
  %v181 = vld [vmem:[%s0 + $0x568] sm:$0xff]
  %v182 = vld [vmem:[%s0 + $0x570] sm:$0x3f]
  %v183 = vld [vmem:[%s0 + $0x578] sm:$0x3f]
  %v184 = vld [vmem:[%s0 + $0x580] sm:$0xff]
  %v185 = vld [vmem:[%s0 + $0x588] sm:$0xff]
  %v186 = vld [vmem:[%s0 + $0x590] sm:$0x3f]
  %v187 = vld [vmem:[%s0 + $0x598] sm:$0x3f]
  %v188 = vld [vmem:[%s0 + $0x5a0] sm:$0xff]
  %v189 = vld [vmem:[%s0 + $0x5a8] sm:$0xff]
  %v190 = vld [vmem:[%s0 + $0x5b0] sm:$0x3f]
  %v191 = vld [vmem:[%s0 + $0x5b8] sm:$0x3f]
  %v192 = vld [vmem:[%s0 + $0x5c0] sm:$0xff]
  %v193 = vld [vmem:[%s0 + $0x5c8] sm:$0xff]
  %v194 = vld [vmem:[%s0 + $0x5d0] sm:$0x3f]
  %v195 = vld [vmem:[%s0 + $0x5d8] sm:$0x3f]
  %v196 = vld [vmem:[%s0 + $0x5e0] sm:$0xff]
  %v197 = vld [vmem:[%s0 + $0x5e8] sm:$0xff]
  %v198 = vld [vmem:[%s0 + $0x5f0] sm:$0x3f]
  %v199 = vld [vmem:[%s0 + $0x5f8] sm:$0x3f]
  %v200 = vld [vmem:[%s0 + $0x600] sm:$0xff]
  %v201 = vld [vmem:[%s0 + $0x608] sm:$0xff]
  %v202 = vld [vmem:[%s0 + $0x610] sm:$0x3f]
  %v203 = vld [vmem:[%s0 + $0x618] sm:$0x3f]
  %v204 = vld [vmem:[%s0 + $0x620] sm:$0xff]
  %v205 = vld [vmem:[%s0 + $0x628] sm:$0xff]
  %v206 = vld [vmem:[%s0 + $0x630] sm:$0x3f]
  %v207 = vld [vmem:[%s0 + $0x638] sm:$0x3f]
  %v208 = vld [vmem:[%s0 + $0x640] sm:$0xff]
  %v209 = vld [vmem:[%s0 + $0x648] sm:$0xff]
  %v210 = vld [vmem:[%s0 + $0x650] sm:$0x3f]
  %v211 = vld [vmem:[%s0 + $0x658] sm:$0x3f]
  %v212 = vld [vmem:[%s0 + $0x660] sm:$0xff]
  %v213 = vld [vmem:[%s0 + $0x668] sm:$0xff]
  %v214 = vld [vmem:[%s0 + $0x670] sm:$0x3f]
  %v215 = vld [vmem:[%s0 + $0x678] sm:$0x3f]
  %v216 = vld [vmem:[%s0 + $0x680] sm:$0xff]
  %v217 = vld [vmem:[%s0 + $0x688] sm:$0xff]
  %v218 = vld [vmem:[%s0 + $0x690] sm:$0x3f]
  %v219 = vld [vmem:[%s0 + $0x698] sm:$0x3f]
  %v220 = vld [vmem:[%s0 + $0x6a0] sm:$0xff]
  %v221 = vld [vmem:[%s0 + $0x6a8] sm:$0xff]
  %v222 = vld [vmem:[%s0 + $0x6b0] sm:$0x3f]
  %v223 = vld [vmem:[%s0 + $0x6b8] sm:$0x3f]
  %v224 = vld [vmem:[%s0 + $0x6c0] sm:$0xff]
  %v225 = vld [vmem:[%s0 + $0x6c8] sm:$0xff]
  %v226 = vld [vmem:[%s0 + $0x6d0] sm:$0x3f]
  %v227 = vld [vmem:[%s0 + $0x6d8] sm:$0x3f]
  %v228 = vld [vmem:[%s0 + $0x6e0] sm:$0xff]
  %v229 = vld [vmem:[%s0 + $0x6e8] sm:$0xff]
  %v230 = vld [vmem:[%s0 + $0x6f0] sm:$0x3f]
  %v231 = vld [vmem:[%s0 + $0x6f8] sm:$0x3f]
  %v232 = vmax.f32 %v8, %v9
  %v233 = vmax.f32 %v10, %v11
  %v234 = vmax.f32 %v16, %v17
  %v235 = vmax.f32 %v18, %v19
  %v236 = vmax.f32 %v24, %v25
  %v237 = vmax.f32 %v26, %v27
  %v238 = vmax.f32 %v32, %v33
  %v239 = vmax.f32 %v34, %v35
  %v240 = vmax.f32 %v40, %v41
  %v241 = vmax.f32 %v42, %v43
  %v242 = vmax.f32 %v48, %v49
  %v243 = vmax.f32 %v50, %v51
  %v244 = vmax.f32 %v56, %v57
  %v245 = vmax.f32 %v58, %v59
  %v246 = vmax.f32 %v64, %v65
  %v247 = vmax.f32 %v66, %v67
  %v248 = vmax.f32 %v72, %v73
  %v249 = vmax.f32 %v74, %v75
  %v250 = vmax.f32 %v80, %v81
  %v251 = vmax.f32 %v82, %v83
  %v252 = vmax.f32 %v88, %v89
  %v253 = vmax.f32 %v90, %v91
  %v254 = vmax.f32 %v96, %v97
  %v255 = vmax.f32 %v98, %v99
  %v256 = vmax.f32 %v104, %v105
  %v257 = vmax.f32 %v106, %v107
  %v258 = vmax.f32 %v112, %v113
  %v259 = vmax.f32 %v114, %v115
  %v260 = vmax.f32 %v120, %v121
  %v261 = vmax.f32 %v122, %v123
  %v262 = vmax.f32 %v128, %v129
  %v263 = vmax.f32 %v130, %v131
  %v264 = vmax.f32 %v136, %v137
  %v265 = vmax.f32 %v138, %v139
  %v266 = vmax.f32 %v144, %v145
  %v267 = vmax.f32 %v146, %v147
  %v268 = vmax.f32 %v152, %v153
  %v269 = vmax.f32 %v154, %v155
  %v270 = vmax.f32 %v160, %v161
  %v271 = vmax.f32 %v162, %v163
  %v272 = vmax.f32 %v168, %v169
  %v273 = vmax.f32 %v170, %v171
  %v274 = vmax.f32 %v176, %v177
  %v275 = vmax.f32 %v178, %v179
  %v276 = vmax.f32 %v184, %v185
  %v277 = vmax.f32 %v186, %v187
  %v278 = vmax.f32 %v192, %v193
  %v279 = vmax.f32 %v194, %v195
  %v280 = vmax.f32 %v200, %v201
  %v281 = vmax.f32 %v202, %v203
  %v282 = vmax.f32 %v208, %v209
  %v283 = vmax.f32 %v210, %v211
  %v284 = vmax.f32 %v216, %v217
  %v285 = vmax.f32 %v218, %v219
  %v286 = vmax.f32 %v224, %v225
  %v287 = vmax.f32 %v226, %v227
  %v288 = vmax.f32 %v12, %v13
  %v289 = vmax.f32 %v14, %v15
  %v290 = vmax.f32 %v20, %v21
  %v291 = vmax.f32 %v22, %v23
  %v292 = vmax.f32 %v28, %v29
  %v293 = vmax.f32 %v30, %v31
  %v294 = vmax.f32 %v36, %v37
  %v295 = vmax.f32 %v38, %v39
  %v296 = vmax.f32 %v44, %v45
  %v297 = vmax.f32 %v46, %v47
  %v298 = vmax.f32 %v52, %v53
  %v299 = vmax.f32 %v54, %v55
  %v300 = vmax.f32 %v60, %v61
  %v301 = vmax.f32 %v62, %v63
  %v302 = vmax.f32 %v68, %v69
  %v303 = vmax.f32 %v70, %v71
  %v304 = vmax.f32 %v76, %v77
  %v305 = vmax.f32 %v78, %v79
  %v306 = vmax.f32 %v84, %v85
  %v307 = vmax.f32 %v86, %v87
  %v308 = vmax.f32 %v92, %v93
  %v309 = vmax.f32 %v94, %v95
  %v310 = vmax.f32 %v100, %v101
  %v311 = vmax.f32 %v102, %v103
  %v312 = vmax.f32 %v108, %v109
  %v313 = vmax.f32 %v110, %v111
  %v314 = vmax.f32 %v116, %v117
  %v315 = vmax.f32 %v118, %v119
  %v316 = vmax.f32 %v124, %v125
  %v317 = vmax.f32 %v126, %v127
  %v318 = vmax.f32 %v132, %v133
  %v319 = vmax.f32 %v134, %v135
  %v320 = vmax.f32 %v140, %v141
  %v321 = vmax.f32 %v142, %v143
  %v322 = vmax.f32 %v148, %v149
  %v323 = vmax.f32 %v150, %v151
  %v324 = vmax.f32 %v156, %v157
  %v325 = vmax.f32 %v158, %v159
  %v326 = vmax.f32 %v164, %v165
  %v327 = vmax.f32 %v166, %v167
  %v328 = vmax.f32 %v172, %v173
  %v329 = vmax.f32 %v174, %v175
  %v330 = vmax.f32 %v180, %v181
  %v331 = vmax.f32 %v182, %v183
  %v332 = vmax.f32 %v188, %v189
  %v333 = vmax.f32 %v190, %v191
  %v334 = vmax.f32 %v196, %v197
  %v335 = vmax.f32 %v198, %v199
  %v336 = vmax.f32 %v204, %v205
  %v337 = vmax.f32 %v206, %v207
  %v338 = vmax.f32 %v212, %v213
  %v339 = vmax.f32 %v214, %v215
  %v340 = vmax.f32 %v220, %v221
  %v341 = vmax.f32 %v222, %v223
  %v342 = vmax.f32 %v228, %v229
  %v343 = vmax.f32 %v230, %v231
  %v344 = vmax.f32 %v232, %v288
  %v345 = vmax.f32 %v233, %v289
  %v346 = vmax.f32 %v234, %v290
  %v347 = vmax.f32 %v235, %v291
  %v348 = vmax.f32 %v236, %v292
  %v349 = vmax.f32 %v237, %v293
  %v350 = vmax.f32 %v238, %v294
  %v351 = vmax.f32 %v239, %v295
  %v352 = vmax.f32 %v240, %v296
  %v353 = vmax.f32 %v241, %v297
  %v354 = vmax.f32 %v242, %v298
  %v355 = vmax.f32 %v243, %v299
  %v356 = vmax.f32 %v244, %v300
  %v357 = vmax.f32 %v245, %v301
  %v358 = vmax.f32 %v246, %v302
  %v359 = vmax.f32 %v247, %v303
  %v360 = vmax.f32 %v248, %v304
  %v361 = vmax.f32 %v249, %v305
  %v362 = vmax.f32 %v250, %v306
  %v363 = vmax.f32 %v251, %v307
  %v364 = vmax.f32 %v252, %v308
  %v365 = vmax.f32 %v253, %v309
  %v366 = vmax.f32 %v254, %v310
  %v367 = vmax.f32 %v255, %v311
  %v368 = vmax.f32 %v256, %v312
  %v369 = vmax.f32 %v257, %v313
  %v370 = vmax.f32 %v258, %v314
  %v371 = vmax.f32 %v259, %v315
  %v372 = vmax.f32 %v260, %v316
  %v373 = vmax.f32 %v261, %v317
  %v374 = vmax.f32 %v262, %v318
  %v375 = vmax.f32 %v263, %v319
  %v376 = vmax.f32 %v264, %v320
  %v377 = vmax.f32 %v265, %v321
  %v378 = vmax.f32 %v266, %v322
  %v379 = vmax.f32 %v267, %v323
  %v380 = vmax.f32 %v268, %v324
  %v381 = vmax.f32 %v269, %v325
  %v382 = vmax.f32 %v270, %v326
  %v383 = vmax.f32 %v271, %v327
  %v384 = vmax.f32 %v272, %v328
  %v385 = vmax.f32 %v273, %v329
  %v386 = vmax.f32 %v274, %v330
  %v387 = vmax.f32 %v275, %v331
  %v388 = vmax.f32 %v276, %v332
  %v389 = vmax.f32 %v277, %v333
  %v390 = vmax.f32 %v278, %v334
  %v391 = vmax.f32 %v279, %v335
  %v392 = vmax.f32 %v280, %v336
  %v393 = vmax.f32 %v281, %v337
  %v394 = vmax.f32 %v282, %v338
  %v395 = vmax.f32 %v283, %v339
  %v396 = vmax.f32 %v284, %v340
  %v397 = vmax.f32 %v285, %v341
  %v398 = vmax.f32 %v286, %v342
  %v399 = vmax.f32 %v287, %v343
  %400 = vst [vmem:[%s1] sm:$0xff] %v344
  %401 = vst [vmem:[%s1 + $0x8] sm:$0x3f] %v345
  %402 = vst [vmem:[%s1 + $0x10] sm:$0xff] %v346
  %403 = vst [vmem:[%s1 + $0x18] sm:$0x3f] %v347
  %404 = vst [vmem:[%s1 + $0x20] sm:$0xff] %v348
  %405 = vst [vmem:[%s1 + $0x28] sm:$0x3f] %v349
  %406 = vst [vmem:[%s1 + $0x30] sm:$0xff] %v350
  %407 = vst [vmem:[%s1 + $0x38] sm:$0x3f] %v351
  %408 = vst [vmem:[%s1 + $0x40] sm:$0xff] %v352
  %409 = vst [vmem:[%s1 + $0x48] sm:$0x3f] %v353
  %410 = vst [vmem:[%s1 + $0x50] sm:$0xff] %v354
  %411 = vst [vmem:[%s1 + $0x58] sm:$0x3f] %v355
  %412 = vst [vmem:[%s1 + $0x60] sm:$0xff] %v356
  %413 = vst [vmem:[%s1 + $0x68] sm:$0x3f] %v357
  %414 = vst [vmem:[%s1 + $0x70] sm:$0xff] %v358
  %415 = vst [vmem:[%s1 + $0x78] sm:$0x3f] %v359
  %416 = vst [vmem:[%s1 + $0x80] sm:$0xff] %v360
  %417 = vst [vmem:[%s1 + $0x88] sm:$0x3f] %v361
  %418 = vst [vmem:[%s1 + $0x90] sm:$0xff] %v362
  %419 = vst [vmem:[%s1 + $0x98] sm:$0x3f] %v363
  %420 = vst [vmem:[%s1 + $0xa0] sm:$0xff] %v364
  %421 = vst [vmem:[%s1 + $0xa8] sm:$0x3f] %v365
  %422 = vst [vmem:[%s1 + $0xb0] sm:$0xff] %v366
  %423 = vst [vmem:[%s1 + $0xb8] sm:$0x3f] %v367
  %424 = vst [vmem:[%s1 + $0xc0] sm:$0xff] %v368
  %425 = vst [vmem:[%s1 + $0xc8] sm:$0x3f] %v369
  %426 = vst [vmem:[%s1 + $0xd0] sm:$0xff] %v370
  %427 = vst [vmem:[%s1 + $0xd8] sm:$0x3f] %v371
  %428 = vst [vmem:[%s1 + $0xe0] sm:$0xff] %v372
  %429 = vst [vmem:[%s1 + $0xe8] sm:$0x3f] %v373
  %430 = vst [vmem:[%s1 + $0xf0] sm:$0xff] %v374
  %431 = vst [vmem:[%s1 + $0xf8] sm:$0x3f] %v375
  %432 = vst [vmem:[%s1 + $0x100] sm:$0xff] %v376
  %433 = vst [vmem:[%s1 + $0x108] sm:$0x3f] %v377
  %434 = vst [vmem:[%s1 + $0x110] sm:$0xff] %v378
  %435 = vst [vmem:[%s1 + $0x118] sm:$0x3f] %v379
  %436 = vst [vmem:[%s1 + $0x120] sm:$0xff] %v380
  %437 = vst [vmem:[%s1 + $0x128] sm:$0x3f] %v381
  %438 = vst [vmem:[%s1 + $0x130] sm:$0xff] %v382
  %439 = vst [vmem:[%s1 + $0x138] sm:$0x3f] %v383
  %440 = vst [vmem:[%s1 + $0x140] sm:$0xff] %v384
  %441 = vst [vmem:[%s1 + $0x148] sm:$0x3f] %v385
  %442 = vst [vmem:[%s1 + $0x150] sm:$0xff] %v386
  %443 = vst [vmem:[%s1 + $0x158] sm:$0x3f] %v387
  %444 = vst [vmem:[%s1 + $0x160] sm:$0xff] %v388
  %445 = vst [vmem:[%s1 + $0x168] sm:$0x3f] %v389
  %446 = vst [vmem:[%s1 + $0x170] sm:$0xff] %v390
  %447 = vst [vmem:[%s1 + $0x178] sm:$0x3f] %v391
  %448 = vst [vmem:[%s1 + $0x180] sm:$0xff] %v392
  %449 = vst [vmem:[%s1 + $0x188] sm:$0x3f] %v393
  %450 = vst [vmem:[%s1 + $0x190] sm:$0xff] %v394
  %451 = vst [vmem:[%s1 + $0x198] sm:$0x3f] %v395
  %452 = vst [vmem:[%s1 + $0x1a0] sm:$0xff] %v396
  %453 = vst [vmem:[%s1 + $0x1a8] sm:$0x3f] %v397
  %454 = vst [vmem:[%s1 + $0x1b0] sm:$0xff] %v398
  %455 = vst [vmem:[%s1 + $0x1b8] sm:$0x3f] %v399
  // Predicated region
  $region6: #{net_forward.6} parent=0 // pred_check
    _
  $region7: #{net_forward.6} parent=0 // pred_check_branch
    %457 = sbr.rel (0) target = $region9
  $region8: #{net_forward.6} parent=0 // pred_region
    _
  $region9: #{net_forward.6} parent=0 // pred_fallthru
    _
  // Predicated region
  $region10: #{net_forward.6} parent=0 // pred_check
    _
  $region11: #{net_forward.6} parent=0 // pred_check_branch
    %459 = sbr.rel (0) target = $region13
  $region12: #{net_forward.6} parent=0 // pred_region
    _
  $region13: #{net_forward.6} parent=0 // pred_fallthru
    _

// kernel: net_forward.7
$region0: #{net_forward.7}
  #allocation0 [shape = 'u32[]', space=smem, size = 0x4, offset = 0x4, fixed_abs, tag = 'smem constant byte address 0x4 - core index']
  #allocation1 [shape = 'u32[144,128]{1,0:T(1,128)}', space=vmem, size = 0x12000, scoped, tag = 'internal scratch']
  %s0 = inlined_call_operand.vmem [shape: f32[200,150], index: 0, kind: input, shape index: {}]
  %s1 = inlined_call_operand.vmem [shape: f32[150,128], index: 1, kind: input, shape index: {}]
  %s2 = inlined_call_operand.vmem [shape: f32[1,128], index: 2, kind: input, shape index: {}]
  %s3 = inlined_call_operand.vmem [shape: f32[200,128], index: 3, kind: output, shape index: {}]
  %s4 = sld [smem:[#allocation0]]
  $region22: #{net_forward.7} parent=0
    _
  %s6 = ssub.s32 1, %s4
  %s7 = scalar_select 0, %s6, %s4
  // Predicated region
  $region2: #{net_forward.7} parent=0 // pred_check
    _
  $region3: #{net_forward.7} parent=0 // pred_check_branch
    %9 = sbr.rel (0) target = $region5
  $region4: #{net_forward.7} parent=0 // pred_region
    _
  $region5: #{net_forward.7} parent=0 // pred_fallthru
    _
  // Predicated region
  $region6: #{net_forward.7} parent=0 // pred_check
    _
  $region7: #{net_forward.7} parent=0 // pred_check_branch
    %11 = sbr.rel (0) target = $region9
  $region8: #{net_forward.7} parent=0 // pred_region
    _
  $region9: #{net_forward.7} parent=0 // pred_fallthru
    _
  // Predicated region
  $region10: #{net_forward.7} parent=0 // pred_check
    _
  $region11: #{net_forward.7} parent=0 // pred_check_branch
    %13 = sbr.rel (0) target = $region13
  $region12: #{net_forward.7} parent=0 // pred_region
    _
  $region13: #{net_forward.7} parent=0 // pred_fallthru
    _
  %v14 = vld [vmem:[%s0] sm:$0xff]
  %v15 = vld [vmem:[%s0 + $0x8] sm:$0xff]
  %v16 = vld [vmem:[%s0 + $0x10] sm:$0xff]
  %v17 = vld [vmem:[%s0 + $0x18] sm:$0xff]
  %v18 = vld [vmem:[%s0 + $0x20] sm:$0xff]
  %v19 = vld [vmem:[%s0 + $0x28] sm:$0xff]
  %v20 = vld [vmem:[%s0 + $0x30] sm:$0xff]
  %v21 = vld [vmem:[%s0 + $0x38] sm:$0xff]
  %v22 = vld [vmem:[%s0 + $0x40] sm:$0xff]
  %v23 = vld [vmem:[%s0 + $0x48] sm:$0xff]
  %v24 = vld [vmem:[%s0 + $0x50] sm:$0xff]
  %v25 = vld [vmem:[%s0 + $0x58] sm:$0xff]
  %v26 = vld [vmem:[%s0 + $0x60] sm:$0xff]
  %v27 = vld [vmem:[%s0 + $0x68] sm:$0xff]
  %v28 = vld [vmem:[%s0 + $0x70] sm:$0xff]
  %v29 = vld [vmem:[%s0 + $0x78] sm:$0xff]
  %v30 = vld [vmem:[%s0 + $0x80] sm:$0xff]
  %v31 = vld [vmem:[%s0 + $0x88] sm:$0xff]
  %v32 = vld [vmem:[%s0 + $0x90] sm:$0xff]
  %v33 = vld [vmem:[%s0 + $0x98] sm:$0xff]
  %v34 = vld [vmem:[%s0 + $0xa0] sm:$0xff]
  %v35 = vld [vmem:[%s0 + $0xa8] sm:$0xff]
  %v36 = vld [vmem:[%s0 + $0xb0] sm:$0xff]
  %v37 = vld [vmem:[%s0 + $0xb8] sm:$0xff]
  %v38 = vld [vmem:[%s0 + $0xc0] sm:$0xff]
  %v39 = vld [vmem:[%s0 + $0xc8] sm:$0xff]
  %v40 = vld [vmem:[%s0 + $0xd0] sm:$0xff]
  %v41 = vld [vmem:[%s0 + $0xd8] sm:$0xff]
  %v42 = vld [vmem:[%s0 + $0xe0] sm:$0xff]
  %v43 = vld [vmem:[%s0 + $0xe8] sm:$0xff]
  %v44 = vld [vmem:[%s0 + $0xf0] sm:$0xff]
  %v45 = vld [vmem:[%s0 + $0xf8] sm:$0xff]
  %v46 = vld [vmem:[%s0 + $0x100] sm:$0xff]
  %v47 = vld [vmem:[%s0 + $0x108] sm:$0xff]
  %v48 = vld [vmem:[%s0 + $0x110] sm:$0xff]
  %v49 = vld [vmem:[%s0 + $0x118] sm:$0xff]
  %v50 = vld [vmem:[%s0 + $0x120] sm:$0xff]
  %v51 = vld [vmem:[%s0 + $0x128] sm:$0xff]
  %v52 = vld [vmem:[%s0 + $0x130] sm:$0xff]
  %v53 = vld [vmem:[%s0 + $0x138] sm:$0xff]
  %v54 = vld [vmem:[%s0 + $0x140] sm:$0xff]
  %v55 = vld [vmem:[%s0 + $0x148] sm:$0xff]
  %v56 = vld [vmem:[%s0 + $0x150] sm:$0xff]
  %v57 = vld [vmem:[%s0 + $0x158] sm:$0xff]
  %v58 = vld [vmem:[%s0 + $0x160] sm:$0xff]
  %v59 = vld [vmem:[%s0 + $0x168] sm:$0xff]
  %v60 = vld [vmem:[%s0 + $0x170] sm:$0xff]
  %v61 = vld [vmem:[%s0 + $0x178] sm:$0xff]
  %v62 = vld [vmem:[%s0 + $0x180] sm:$0xff]
  %v63 = vld [vmem:[%s0 + $0x188] sm:$0xff]
  %v64 = vld [vmem:[%s1] sm:$0xff]
  %v65 = vld [vmem:[%s1 + $0x8] sm:$0xff]
  %v66 = vld [vmem:[%s1 + $0x10] sm:$0xff]
  %v67 = vld [vmem:[%s1 + $0x18] sm:$0xff]
  %v68 = vld [vmem:[%s1 + $0x20] sm:$0xff]
  %v69 = vld [vmem:[%s1 + $0x28] sm:$0xff]
  %v70 = vld [vmem:[%s1 + $0x30] sm:$0xff]
  %v71 = vld [vmem:[%s1 + $0x38] sm:$0xff]
  %v72 = vld [vmem:[%s1 + $0x40] sm:$0xff]
  %v73 = vld [vmem:[%s1 + $0x48] sm:$0xff]
  %v74 = vld [vmem:[%s1 + $0x50] sm:$0xff]
  %v75 = vld [vmem:[%s1 + $0x58] sm:$0xff]
  %v76 = vld [vmem:[%s1 + $0x60] sm:$0xff]
  %v77 = vld [vmem:[%s1 + $0x68] sm:$0xff]
  %v78 = vld [vmem:[%s1 + $0x70] sm:$0xff]
  %v79 = vld [vmem:[%s1 + $0x78] sm:$0xff]
  %v80 = vld [vmem:[%s1 + $0x80] sm:$0xff]
  %v81 = vld [vmem:[%s1 + $0x88] sm:$0xff]
  %v82 = vld [vmem:[%s1 + $0x90] sm:$0x3f]
  %v83 = vld [vmem:[%s2] sm:$0x1]
  %v85 = vlaneseq
  %v86 = vshrl.u32 %v85, 7
  %v87 = vsub.s32 0, %v86
  %v88 = vrot.slane %v83, %v87
  %vm90 = vcmask 179200
  %v92 = vsel %vm90, %v15, 0
  %v95 = vsel %vm90, %v17, 0
  %v98 = vsel %vm90, %v19, 0
  %v101 = vsel %vm90, %v21, 0
  %v104 = vsel %vm90, %v23, 0
  %v107 = vsel %vm90, %v25, 0
  %v110 = vsel %vm90, %v27, 0
  %v113 = vsel %vm90, %v29, 0
  %v116 = vsel %vm90, %v31, 0
  %v119 = vsel %vm90, %v33, 0
  %v122 = vsel %vm90, %v35, 0
  %v125 = vsel %vm90, %v37, 0
  %v128 = vsel %vm90, %v39, 0
  %v131 = vsel %vm90, %v41, 0
  %v134 = vsel %vm90, %v43, 0
  %v137 = vsel %vm90, %v45, 0
  %v140 = vsel %vm90, %v47, 0
  %v143 = vsel %vm90, %v49, 0
  %v146 = vsel %vm90, %v51, 0
  %v149 = vsel %vm90, %v53, 0
  %v152 = vsel %vm90, %v55, 0
  %v155 = vsel %vm90, %v57, 0
  %v158 = vsel %vm90, %v59, 0
  %v161 = vsel %vm90, %v61, 0
  %v164 = vsel %vm90, %v63, 0
  %vm166 = vcmask 1045504
  %v168 = vsel %vm166, %v82, 0
  %170 = vmatprep.subr.mxu0 0.0
  %171 = vmatpush1.msra.mxu0 %v64
  %172 = vmatprep.subr.mxu0 0.0
  %173 = vmatpush1.msra.mxu0 %v65
  %174 = vmatprep.subr.mxu0 0.0
  %175 = vmatpush1.msra.mxu0 %v66
  %176 = vmatprep.subr.mxu0 0.0
  %177 = vmatpush1.msra.mxu0 %v67
  %178 = vmatprep.subr.mxu0 0.0
  %179 = vmatpush1.msra.mxu0 %v68
  %180 = vmatprep.subr.mxu0 0.0
  %181 = vmatpush1.msra.mxu0 %v69
  %182 = vmatprep.subr.mxu0 0.0
  %183 = vmatpush1.msra.mxu0 %v70
  %184 = vmatprep.subr.mxu0 0.0
  %185 = vmatpush1.msra.mxu0 %v71
  %186 = vmatprep.subr.mxu0 0.0
  %187 = vmatpush1.msra.mxu0 %v72
  %188 = vmatprep.subr.mxu0 0.0
  %189 = vmatpush1.msra.mxu0 %v73
  %190 = vmatprep.subr.mxu0 0.0
  %191 = vmatpush1.msra.mxu0 %v74
  %192 = vmatprep.subr.mxu0 0.0
  %193 = vmatpush1.msra.mxu0 %v75
  %194 = vmatprep.subr.mxu0 0.0
  %195 = vmatpush1.msra.mxu0 %v76
  %196 = vmatprep.subr.mxu0 0.0
  %197 = vmatpush1.msra.mxu0 %v77
  %198 = vmatprep.subr.mxu0 0.0
  %199 = vmatpush1.msra.mxu0 %v78
  %200 = vmatprep.subr.mxu0 0.0
  %201 = vmatpush1.msra.mxu0 %v79
  %202 = vmatprep.subr.mxu0 0.0
  %203 = vmatpush1.msra.mxu0 %v80
  %204 = vmatprep.subr.mxu0 0.0
  %205 = vmatpush1.msra.mxu0 %v81
  %206 = vmatprep.subr.mxu0 0.0
  %207 = vmatpush1.msra.mxu0 %v168
  %208 = vmatprep.subr.mxu0 0.0
  %209 = vmatpush1.msra.mxu0 0.0
  %210 = vmatprep.subr.mxu0 0.0
  %211 = vmatpush1.msra.mxu0 0.0
  %212 = vmatprep.subr.mxu0 0.0
  %213 = vmatpush1.msra.mxu0 0.0
  %214 = vmatprep.subr.mxu0 0.0
  %215 = vmatpush1.msra.mxu0 0.0
  %216 = vmatprep.subr.mxu0 0.0
  %217 = vmatpush1.msra.mxu0 0.0
  %218 = vmatprep.subr.mxu0 0.0
  %219 = vmatpush1.msra.mxu0 0.0
  %220 = vmatprep.subr.mxu0 0.0
  %221 = vmatpush1.msra.mxu0 0.0
  %222 = vmatprep.subr.mxu0 0.0
  %223 = vmatpush1.msra.mxu0 0.0
  %224 = vmatprep.subr.mxu0 0.0
  %225 = vmatpush1.msra.mxu0 0.0
  %226 = vmatprep.subr.mxu0 0.0
  %227 = vmatpush1.msra.mxu0 0.0
  %228 = vmatprep.subr.mxu0 0.0
  %229 = vmatpush1.msra.mxu0 0.0
  %230 = vmatprep.subr.mxu0 0.0
  %231 = vmatpush1.msra.mxu0 0.0
  %232 = vmatprep.subr.mxu0 0.0
  %233 = vmatpush1.msra.mxu0 0.0
  %234 = vmatprep.mubr.f32.mxu0 %v92
  %235 = vmatmul.mubr.f32.gmra.mrb[0].mxu0 %v14
  %v236 = vpop.f32.mrb[0].mxu0
  %v237 = vadd.f32 %v88, %v236
  %v238 = vpop.f32.mrb[0].mxu0
  %239 = vmatprep.mubr.f32.mxu0 %v95
  %240 = vmatmul.mubr.f32.gmra.mrb[0].mxu0 %v16
  %v241 = vpop.f32.mrb[0].mxu0
  %v242 = vadd.f32 %v88, %v241
  %v243 = vpop.f32.mrb[0].mxu0
  %244 = vmatprep.mubr.f32.mxu0 %v98
  %245 = vmatmul.mubr.f32.gmra.mrb[0].mxu0 %v18
  %v246 = vpop.f32.mrb[0].mxu0
  %v247 = vadd.f32 %v88, %v246
  %v248 = vpop.f32.mrb[0].mxu0
  %249 = vmatprep.mubr.f32.mxu0 %v101
  %250 = vmatmul.mubr.f32.gmra.mrb[0].mxu0 %v20
  %v251 = vpop.f32.mrb[0].mxu0
  %v252 = vadd.f32 %v88, %v251
  %v253 = vpop.f32.mrb[0].mxu0
  %254 = vmatprep.mubr.f32.mxu0 %v104
  %255 = vmatmul.mubr.f32.gmra.mrb[0].mxu0 %v22
  %v256 = vpop.f32.mrb[0].mxu0
  %v257 = vadd.f32 %v88, %v256
  %v258 = vpop.f32.mrb[0].mxu0
  %259 = vmatprep.mubr.f32.mxu0 %v107
  %260 = vmatmul.mubr.f32.gmra.mrb[0].mxu0 %v24
  %v261 = vpop.f32.mrb[0].mxu0
  %v262 = vadd.f32 %v88, %v261
  %v263 = vpop.f32.mrb[0].mxu0
  %264 = vmatprep.mubr.f32.mxu0 %v110
  %265 = vmatmul.mubr.f32.gmra.mrb[0].mxu0 %v26
  %v266 = vpop.f32.mrb[0].mxu0
  %v267 = vadd.f32 %v88, %v266
  %v268 = vpop.f32.mrb[0].mxu0
  %269 = vmatprep.mubr.f32.mxu0 %v113
  %270 = vmatmul.mubr.f32.gmra.mrb[0].mxu0 %v28
  %v271 = vpop.f32.mrb[0].mxu0
  %v272 = vadd.f32 %v88, %v271
  %v273 = vpop.f32.mrb[0].mxu0
  %274 = vmatprep.mubr.f32.mxu0 %v116
  %275 = vmatmul.mubr.f32.gmra.mrb[0].mxu0 %v30
  %v276 = vpop.f32.mrb[0].mxu0
  %v277 = vadd.f32 %v88, %v276
  %v278 = vpop.f32.mrb[0].mxu0
  %279 = vmatprep.mubr.f32.mxu0 %v119
  %280 = vmatmul.mubr.f32.gmra.mrb[0].mxu0 %v32
  %v281 = vpop.f32.mrb[0].mxu0
  %v282 = vadd.f32 %v88, %v281
  %v283 = vpop.f32.mrb[0].mxu0
  %284 = vmatprep.mubr.f32.mxu0 %v122
  %285 = vmatmul.mubr.f32.gmra.mrb[0].mxu0 %v34
  %v286 = vpop.f32.mrb[0].mxu0
  %v287 = vadd.f32 %v88, %v286
  %v288 = vpop.f32.mrb[0].mxu0
  %289 = vmatprep.mubr.f32.mxu0 %v125
  %290 = vmatmul.mubr.f32.gmra.mrb[0].mxu0 %v36
  %v291 = vpop.f32.mrb[0].mxu0
  %v292 = vadd.f32 %v88, %v291
  %v293 = vpop.f32.mrb[0].mxu0
  %294 = vmatprep.mubr.f32.mxu0 %v128
  %295 = vmatmul.mubr.f32.gmra.mrb[0].mxu0 %v38
  %v296 = vpop.f32.mrb[0].mxu0
  %v297 = vadd.f32 %v88, %v296
  %v298 = vpop.f32.mrb[0].mxu0
  %299 = vmatprep.mubr.f32.mxu0 %v131
  %300 = vmatmul.mubr.f32.gmra.mrb[0].mxu0 %v40
  %v301 = vpop.f32.mrb[0].mxu0
  %v302 = vadd.f32 %v88, %v301
  %v303 = vpop.f32.mrb[0].mxu0
  %304 = vmatprep.mubr.f32.mxu0 %v134
  %305 = vmatmul.mubr.f32.gmra.mrb[0].mxu0 %v42
  %v306 = vpop.f32.mrb[0].mxu0
  %v307 = vadd.f32 %v88, %v306
  %v308 = vpop.f32.mrb[0].mxu0
  %309 = vmatprep.mubr.f32.mxu0 %v137
  %310 = vmatmul.mubr.f32.gmra.mrb[0].mxu0 %v44
  %v311 = vpop.f32.mrb[0].mxu0
  %v312 = vadd.f32 %v88, %v311
  %v313 = vpop.f32.mrb[0].mxu0
  %314 = vmatprep.mubr.f32.mxu0 %v140
  %315 = vmatmul.mubr.f32.gmra.mrb[0].mxu0 %v46
  %v316 = vpop.f32.mrb[0].mxu0
  %v317 = vadd.f32 %v88, %v316
  %v318 = vpop.f32.mrb[0].mxu0
  %319 = vmatprep.mubr.f32.mxu0 %v143
  %320 = vmatmul.mubr.f32.gmra.mrb[0].mxu0 %v48
  %v321 = vpop.f32.mrb[0].mxu0
  %v322 = vadd.f32 %v88, %v321
  %v323 = vpop.f32.mrb[0].mxu0
  %324 = vmatprep.mubr.f32.mxu0 %v146
  %325 = vmatmul.mubr.f32.gmra.mrb[0].mxu0 %v50
  %v326 = vpop.f32.mrb[0].mxu0
  %v327 = vadd.f32 %v88, %v326
  %v328 = vpop.f32.mrb[0].mxu0
  %329 = vmatprep.mubr.f32.mxu0 %v149
  %330 = vmatmul.mubr.f32.gmra.mrb[0].mxu0 %v52
  %v331 = vpop.f32.mrb[0].mxu0
  %v332 = vadd.f32 %v88, %v331
  %v333 = vpop.f32.mrb[0].mxu0
  %334 = vmatprep.mubr.f32.mxu0 %v152
  %335 = vmatmul.mubr.f32.gmra.mrb[0].mxu0 %v54
  %v336 = vpop.f32.mrb[0].mxu0
  %v337 = vadd.f32 %v88, %v336
  %v338 = vpop.f32.mrb[0].mxu0
  %339 = vmatprep.mubr.f32.mxu0 %v155
  %340 = vmatmul.mubr.f32.gmra.mrb[0].mxu0 %v56
  %v341 = vpop.f32.mrb[0].mxu0
  %v342 = vadd.f32 %v88, %v341
  %v343 = vpop.f32.mrb[0].mxu0
  %344 = vmatprep.mubr.f32.mxu0 %v158
  %345 = vmatmul.mubr.f32.gmra.mrb[0].mxu0 %v58
  %v346 = vpop.f32.mrb[0].mxu0
  %v347 = vadd.f32 %v88, %v346
  %v348 = vpop.f32.mrb[0].mxu0
  %349 = vmatprep.mubr.f32.mxu0 %v161
  %350 = vmatmul.mubr.f32.gmra.mrb[0].mxu0 %v60
  %v351 = vpop.f32.mrb[0].mxu0
  %v352 = vadd.f32 %v88, %v351
  %v353 = vpop.f32.mrb[0].mxu0
  %354 = vmatprep.mubr.f32.mxu0 %v164
  %355 = vmatmul.mubr.f32.gmra.mrb[0].mxu0 %v62
  %v356 = vpop.f32.mrb[0].mxu0
  %v357 = vadd.f32 %v88, %v356
  %v358 = vpop.f32.mrb[0].mxu0
  %359 = vdwg.mxu0
  %v360 = vmax.f32 %v237, 0.0
  %v361 = vmax.f32 %v242, 0.0
  %v362 = vmax.f32 %v247, 0.0
  %v363 = vmax.f32 %v252, 0.0
  %v364 = vmax.f32 %v257, 0.0
  %v365 = vmax.f32 %v262, 0.0
  %v366 = vmax.f32 %v267, 0.0
  %v367 = vmax.f32 %v272, 0.0
  %v368 = vmax.f32 %v277, 0.0
  %v369 = vmax.f32 %v282, 0.0
  %v370 = vmax.f32 %v287, 0.0
  %v371 = vmax.f32 %v292, 0.0
  %v372 = vmax.f32 %v297, 0.0
  %v373 = vmax.f32 %v302, 0.0
  %v374 = vmax.f32 %v307, 0.0
  %v375 = vmax.f32 %v312, 0.0
  %v376 = vmax.f32 %v317, 0.0
  %v377 = vmax.f32 %v322, 0.0
  %v378 = vmax.f32 %v327, 0.0
  %v379 = vmax.f32 %v332, 0.0
  %v380 = vmax.f32 %v337, 0.0
  %v381 = vmax.f32 %v342, 0.0
  %v382 = vmax.f32 %v347, 0.0
  %v383 = vmax.f32 %v352, 0.0
  %v384 = vmax.f32 %v357, 0.0
  %385 = vst [vmem:[%s3] sm:$0xff] %v360
  %386 = vst [vmem:[%s3 + $0x8] sm:$0xff] %v361
  %387 = vst [vmem:[%s3 + $0x10] sm:$0xff] %v362
  %388 = vst [vmem:[%s3 + $0x18] sm:$0xff] %v363
  %389 = vst [vmem:[%s3 + $0x20] sm:$0xff] %v364
  %390 = vst [vmem:[%s3 + $0x28] sm:$0xff] %v365
  %391 = vst [vmem:[%s3 + $0x30] sm:$0xff] %v366
  %392 = vst [vmem:[%s3 + $0x38] sm:$0xff] %v367
  %393 = vst [vmem:[%s3 + $0x40] sm:$0xff] %v368
  %394 = vst [vmem:[%s3 + $0x48] sm:$0xff] %v369
  %395 = vst [vmem:[%s3 + $0x50] sm:$0xff] %v370
  %396 = vst [vmem:[%s3 + $0x58] sm:$0xff] %v371
  %397 = vst [vmem:[%s3 + $0x60] sm:$0xff] %v372
  %398 = vst [vmem:[%s3 + $0x68] sm:$0xff] %v373
  %399 = vst [vmem:[%s3 + $0x70] sm:$0xff] %v374
  %400 = vst [vmem:[%s3 + $0x78] sm:$0xff] %v375
  %401 = vst [vmem:[%s3 + $0x80] sm:$0xff] %v376
  %402 = vst [vmem:[%s3 + $0x88] sm:$0xff] %v377
  %403 = vst [vmem:[%s3 + $0x90] sm:$0xff] %v378
  %404 = vst [vmem:[%s3 + $0x98] sm:$0xff] %v379
  %405 = vst [vmem:[%s3 + $0xa0] sm:$0xff] %v380
  %406 = vst [vmem:[%s3 + $0xa8] sm:$0xff] %v381
  %407 = vst [vmem:[%s3 + $0xb0] sm:$0xff] %v382
  %408 = vst [vmem:[%s3 + $0xb8] sm:$0xff] %v383
  %409 = vst [vmem:[%s3 + $0xc0] sm:$0xff] %v384
  // Predicated region
  $region14: #{net_forward.7} parent=0 // pred_check
    _
  $region15: #{net_forward.7} parent=0 // pred_check_branch
    %411 = sbr.rel (0) target = $region17
  $region16: #{net_forward.7} parent=0 // pred_region
    _
  $region17: #{net_forward.7} parent=0 // pred_fallthru
    _
  // Predicated region
  $region18: #{net_forward.7} parent=0 // pred_check
    _
  $region19: #{net_forward.7} parent=0 // pred_check_branch
    %413 = sbr.rel (0) target = $region21
  $region20: #{net_forward.7} parent=0 // pred_region
    _
  $region21: #{net_forward.7} parent=0 // pred_fallthru
    _

// kernel: net_forward.8
$region0: #{net_forward.8}
  #allocation0 [shape = 'u32[]', space=smem, size = 0x4, offset = 0x4, fixed_abs, tag = 'smem constant byte address 0x4 - core index']
  #allocation1 [shape = 'u32[144,128]{1,0:T(1,128)}', space=vmem, size = 0x12000, scoped, tag = 'internal scratch']
  %s0 = inlined_call_operand.vmem [shape: f32[10,2,5,256], index: 0, kind: input, shape index: {}]
  %s1 = inlined_call_operand.vmem [shape: f32[10,5,128], index: 1, kind: output, shape index: {}]
  %s2 = sld [smem:[#allocation0]]
  $region14: #{net_forward.8} parent=0
    _
  %s4 = ssub.s32 1, %s2
  %s5 = scalar_select 0, %s4, %s2
  // Predicated region
  $region2: #{net_forward.8} parent=0 // pred_check
    _
  $region3: #{net_forward.8} parent=0 // pred_check_branch
    %7 = sbr.rel (0) target = $region5
  $region4: #{net_forward.8} parent=0 // pred_region
    _
  $region5: #{net_forward.8} parent=0 // pred_fallthru
    _
  %v8 = vld [vmem:[%s0] sm:$0x1f]
  %v9 = vld [vmem:[%s0 + $0x8] sm:$0x1f]
  %v10 = vld [vmem:[%s0 + $0x10] sm:$0x1f]
  %v11 = vld [vmem:[%s0 + $0x18] sm:$0x1f]
  %v12 = vld [vmem:[%s0 + $0x20] sm:$0x1f]
  %v13 = vld [vmem:[%s0 + $0x28] sm:$0x1f]
  %v14 = vld [vmem:[%s0 + $0x30] sm:$0x1f]
  %v15 = vld [vmem:[%s0 + $0x38] sm:$0x1f]
  %v16 = vld [vmem:[%s0 + $0x40] sm:$0x1f]
  %v17 = vld [vmem:[%s0 + $0x48] sm:$0x1f]
  %v18 = vld [vmem:[%s0 + $0x50] sm:$0x1f]
  %v19 = vld [vmem:[%s0 + $0x58] sm:$0x1f]
  %v20 = vld [vmem:[%s0 + $0x60] sm:$0x1f]
  %v21 = vld [vmem:[%s0 + $0x68] sm:$0x1f]
  %v22 = vld [vmem:[%s0 + $0x70] sm:$0x1f]
  %v23 = vld [vmem:[%s0 + $0x78] sm:$0x1f]
  %v24 = vld [vmem:[%s0 + $0x80] sm:$0x1f]
  %v25 = vld [vmem:[%s0 + $0x88] sm:$0x1f]
  %v26 = vld [vmem:[%s0 + $0x90] sm:$0x1f]
  %v27 = vld [vmem:[%s0 + $0x98] sm:$0x1f]
  %v28 = vld [vmem:[%s0 + $0xa0] sm:$0x1f]
  %v29 = vld [vmem:[%s0 + $0xa8] sm:$0x1f]
  %v30 = vld [vmem:[%s0 + $0xb0] sm:$0x1f]
  %v31 = vld [vmem:[%s0 + $0xb8] sm:$0x1f]
  %v32 = vld [vmem:[%s0 + $0xc0] sm:$0x1f]
  %v33 = vld [vmem:[%s0 + $0xc8] sm:$0x1f]
  %v34 = vld [vmem:[%s0 + $0xd0] sm:$0x1f]
  %v35 = vld [vmem:[%s0 + $0xd8] sm:$0x1f]
  %v36 = vld [vmem:[%s0 + $0xe0] sm:$0x1f]
  %v37 = vld [vmem:[%s0 + $0xe8] sm:$0x1f]
  %v38 = vld [vmem:[%s0 + $0xf0] sm:$0x1f]
  %v39 = vld [vmem:[%s0 + $0xf8] sm:$0x1f]
  %v40 = vld [vmem:[%s0 + $0x100] sm:$0x1f]
  %v41 = vld [vmem:[%s0 + $0x108] sm:$0x1f]
  %v42 = vld [vmem:[%s0 + $0x110] sm:$0x1f]
  %v43 = vld [vmem:[%s0 + $0x118] sm:$0x1f]
  %v44 = vld [vmem:[%s0 + $0x120] sm:$0x1f]
  %v45 = vld [vmem:[%s0 + $0x128] sm:$0x1f]
  %v46 = vld [vmem:[%s0 + $0x130] sm:$0x1f]
  %v47 = vld [vmem:[%s0 + $0x138] sm:$0x1f]
  %v48 = vmax.f32 %v8, %v9
  %v49 = vmax.f32 %v12, %v13
  %v50 = vmax.f32 %v16, %v17
  %v51 = vmax.f32 %v20, %v21
  %v52 = vmax.f32 %v24, %v25
  %v53 = vmax.f32 %v28, %v29
  %v54 = vmax.f32 %v32, %v33
  %v55 = vmax.f32 %v36, %v37
  %v56 = vmax.f32 %v40, %v41
  %v57 = vmax.f32 %v44, %v45
  %v58 = vmax.f32 %v10, %v11
  %v59 = vmax.f32 %v14, %v15
  %v60 = vmax.f32 %v18, %v19
  %v61 = vmax.f32 %v22, %v23
  %v62 = vmax.f32 %v26, %v27
  %v63 = vmax.f32 %v30, %v31
  %v64 = vmax.f32 %v34, %v35
  %v65 = vmax.f32 %v38, %v39
  %v66 = vmax.f32 %v42, %v43
  %v67 = vmax.f32 %v46, %v47
  %v68 = vmax.f32 %v48, %v58
  %v69 = vmax.f32 %v49, %v59
  %v70 = vmax.f32 %v50, %v60
  %v71 = vmax.f32 %v51, %v61
  %v72 = vmax.f32 %v52, %v62
  %v73 = vmax.f32 %v53, %v63
  %v74 = vmax.f32 %v54, %v64
  %v75 = vmax.f32 %v55, %v65
  %v76 = vmax.f32 %v56, %v66
  %v77 = vmax.f32 %v57, %v67
  %78 = vst [vmem:[%s1] sm:$0x1f] %v68
  %79 = vst [vmem:[%s1 + $0x8] sm:$0x1f] %v69
  %80 = vst [vmem:[%s1 + $0x10] sm:$0x1f] %v70
  %81 = vst [vmem:[%s1 + $0x18] sm:$0x1f] %v71
  %82 = vst [vmem:[%s1 + $0x20] sm:$0x1f] %v72
  %83 = vst [vmem:[%s1 + $0x28] sm:$0x1f] %v73
  %84 = vst [vmem:[%s1 + $0x30] sm:$0x1f] %v74
  %85 = vst [vmem:[%s1 + $0x38] sm:$0x1f] %v75
  %86 = vst [vmem:[%s1 + $0x40] sm:$0x1f] %v76
  %87 = vst [vmem:[%s1 + $0x48] sm:$0x1f] %v77
  // Predicated region
  $region6: #{net_forward.8} parent=0 // pred_check
    _
  $region7: #{net_forward.8} parent=0 // pred_check_branch
    %89 = sbr.rel (0) target = $region9
  $region8: #{net_forward.8} parent=0 // pred_region
    _
  $region9: #{net_forward.8} parent=0 // pred_fallthru
    _
  // Predicated region
  $region10: #{net_forward.8} parent=0 // pred_check
    _
  $region11: #{net_forward.8} parent=0 // pred_check_branch
    %91 = sbr.rel (0) target = $region13
  $region12: #{net_forward.8} parent=0 // pred_region
    _
  $region13: #{net_forward.8} parent=0 // pred_fallthru
    _

// kernel: net_forward.9
$region0: #{net_forward.9}
  #allocation0 [shape = 'u32[]', space=smem, size = 0x4, offset = 0x4, fixed_abs, tag = 'smem constant byte address 0x4 - core index']
  #allocation1 [shape = 'u32[144,128]{1,0:T(1,128)}', space=vmem, size = 0x12000, scoped, tag = 'internal scratch']
  %s0 = inlined_call_operand.vmem [shape: f32[8,400], index: 0, kind: input, shape index: {}]
  %s1 = inlined_call_operand.vmem [shape: f32[400,128], index: 1, kind: input, shape index: {}]
  %s2 = inlined_call_operand.vmem [shape: f32[1,128], index: 2, kind: input, shape index: {}]
  %s3 = inlined_call_operand.vmem [shape: f32[128,128], index: 3, kind: input, shape index: {}]
  %s4 = inlined_call_operand.vmem [shape: f32[1,128], index: 4, kind: input, shape index: {}]
  %s5 = inlined_call_operand.vmem [shape: f32[128,128], index: 5, kind: input, shape index: {}]
  %s6 = inlined_call_operand.vmem [shape: f32[1,128], index: 6, kind: input, shape index: {}]
  %s7 = inlined_call_operand.vmem [shape: f32[8,128], index: 7, kind: output, shape index: {}]
  %s8 = sld [smem:[#allocation0]]
  $region38: #{net_forward.9} parent=0
    _
  %s10 = ssub.s32 1, %s8
  %s11 = scalar_select 0, %s10, %s8
  // Predicated region
  $region2: #{net_forward.9} parent=0 // pred_check
    _
  $region3: #{net_forward.9} parent=0 // pred_check_branch
    %13 = sbr.rel (0) target = $region5
  $region4: #{net_forward.9} parent=0 // pred_region
    _
  $region5: #{net_forward.9} parent=0 // pred_fallthru
    _
  // Predicated region
  $region6: #{net_forward.9} parent=0 // pred_check
    _
  $region7: #{net_forward.9} parent=0 // pred_check_branch
    %15 = sbr.rel (0) target = $region9
  $region8: #{net_forward.9} parent=0 // pred_region
    _
  $region9: #{net_forward.9} parent=0 // pred_fallthru
    _
  // Predicated region
  $region10: #{net_forward.9} parent=0 // pred_check
    _
  $region11: #{net_forward.9} parent=0 // pred_check_branch
    %17 = sbr.rel (0) target = $region13
  $region12: #{net_forward.9} parent=0 // pred_region
    _
  $region13: #{net_forward.9} parent=0 // pred_fallthru
    _
  // Predicated region
  $region14: #{net_forward.9} parent=0 // pred_check
    _
  $region15: #{net_forward.9} parent=0 // pred_check_branch
    %19 = sbr.rel (0) target = $region17
  $region16: #{net_forward.9} parent=0 // pred_region
    _
  $region17: #{net_forward.9} parent=0 // pred_fallthru
    _
  // Predicated region
  $region18: #{net_forward.9} parent=0 // pred_check
    _
  $region19: #{net_forward.9} parent=0 // pred_check_branch
    %21 = sbr.rel (0) target = $region21
  $region20: #{net_forward.9} parent=0 // pred_region
    _
  $region21: #{net_forward.9} parent=0 // pred_fallthru
    _
  // Predicated region
  $region22: #{net_forward.9} parent=0 // pred_check
    _
  $region23: #{net_forward.9} parent=0 // pred_check_branch
    %23 = sbr.rel (0) target = $region25
  $region24: #{net_forward.9} parent=0 // pred_region
    _
  $region25: #{net_forward.9} parent=0 // pred_fallthru
    _
  // Predicated region
  $region26: #{net_forward.9} parent=0 // pred_check
    _
  $region27: #{net_forward.9} parent=0 // pred_check_branch
    %25 = sbr.rel (0) target = $region29
  $region28: #{net_forward.9} parent=0 // pred_region
    _
  $region29: #{net_forward.9} parent=0 // pred_fallthru
    _
  %v26 = vld [vmem:[%s0] sm:$0xff]
  %v27 = vld [vmem:[%s0 + $0x8] sm:$0xff]
  %v28 = vld [vmem:[%s0 + $0x10] sm:$0xff]
  %v29 = vld [vmem:[%s0 + $0x18] sm:$0xff]
  %v30 = vld [vmem:[%s1] sm:$0xff]
  %v31 = vld [vmem:[%s1 + $0x8] sm:$0xff]
  %v32 = vld [vmem:[%s1 + $0x10] sm:$0xff]
  %v33 = vld [vmem:[%s1 + $0x18] sm:$0xff]
  %v34 = vld [vmem:[%s1 + $0x20] sm:$0xff]
  %v35 = vld [vmem:[%s1 + $0x28] sm:$0xff]
  %v36 = vld [vmem:[%s1 + $0x30] sm:$0xff]
  %v37 = vld [vmem:[%s1 + $0x38] sm:$0xff]
  %v38 = vld [vmem:[%s1 + $0x40] sm:$0xff]
  %v39 = vld [vmem:[%s1 + $0x48] sm:$0xff]
  %v40 = vld [vmem:[%s1 + $0x50] sm:$0xff]
  %v41 = vld [vmem:[%s1 + $0x58] sm:$0xff]
  %v42 = vld [vmem:[%s1 + $0x60] sm:$0xff]
  %v43 = vld [vmem:[%s1 + $0x68] sm:$0xff]
  %v44 = vld [vmem:[%s1 + $0x70] sm:$0xff]
  %v45 = vld [vmem:[%s1 + $0x78] sm:$0xff]
  %v46 = vld [vmem:[%s1 + $0x80] sm:$0xff]
  %v47 = vld [vmem:[%s1 + $0x88] sm:$0xff]
  %v48 = vld [vmem:[%s1 + $0x90] sm:$0xff]
  %v49 = vld [vmem:[%s1 + $0x98] sm:$0xff]
  %v50 = vld [vmem:[%s1 + $0xa0] sm:$0xff]
  %v51 = vld [vmem:[%s1 + $0xa8] sm:$0xff]
  %v52 = vld [vmem:[%s1 + $0xb0] sm:$0xff]
  %v53 = vld [vmem:[%s1 + $0xb8] sm:$0xff]
  %v54 = vld [vmem:[%s1 + $0xc0] sm:$0xff]
  %v55 = vld [vmem:[%s1 + $0xc8] sm:$0xff]
  %v56 = vld [vmem:[%s1 + $0xd0] sm:$0xff]
  %v57 = vld [vmem:[%s1 + $0xd8] sm:$0xff]
  %v58 = vld [vmem:[%s1 + $0xe0] sm:$0xff]
  %v59 = vld [vmem:[%s1 + $0xe8] sm:$0xff]
  %v60 = vld [vmem:[%s1 + $0xf0] sm:$0xff]
  %v61 = vld [vmem:[%s1 + $0xf8] sm:$0xff]
  %v62 = vld [vmem:[%s1 + $0x100] sm:$0xff]
  %v63 = vld [vmem:[%s1 + $0x108] sm:$0xff]
  %v64 = vld [vmem:[%s1 + $0x110] sm:$0xff]
  %v65 = vld [vmem:[%s1 + $0x118] sm:$0xff]
  %v66 = vld [vmem:[%s1 + $0x120] sm:$0xff]
  %v67 = vld [vmem:[%s1 + $0x128] sm:$0xff]
  %v68 = vld [vmem:[%s1 + $0x130] sm:$0xff]
  %v69 = vld [vmem:[%s1 + $0x138] sm:$0xff]
  %v70 = vld [vmem:[%s1 + $0x140] sm:$0xff]
  %v71 = vld [vmem:[%s1 + $0x148] sm:$0xff]
  %v72 = vld [vmem:[%s1 + $0x150] sm:$0xff]
  %v73 = vld [vmem:[%s1 + $0x158] sm:$0xff]
  %v74 = vld [vmem:[%s1 + $0x160] sm:$0xff]
  %v75 = vld [vmem:[%s1 + $0x168] sm:$0xff]
  %v76 = vld [vmem:[%s1 + $0x170] sm:$0xff]
  %v77 = vld [vmem:[%s1 + $0x178] sm:$0xff]
  %v78 = vld [vmem:[%s1 + $0x180] sm:$0xff]
  %v79 = vld [vmem:[%s1 + $0x188] sm:$0xff]
  %v80 = vld [vmem:[%s2] sm:$0x1]
  %v82 = vlaneseq
  %v83 = vshrl.u32 %v82, 7
  %v84 = vsub.s32 0, %v83
  %v85 = vrot.slane %v80, %v84
  %vm87 = vcmask 130048
  %v89 = vsel %vm87, %v29, 0
  %91 = vmatprep.subr.mxu0 0.0
  %92 = vmatpush1.msra.mxu0 %v30
  %93 = vmatprep.subr.mxu0 0.0
  %94 = vmatpush1.msra.mxu0 %v31
  %95 = vmatprep.subr.mxu0 0.0
  %96 = vmatpush1.msra.mxu0 %v32
  %97 = vmatprep.subr.mxu0 0.0
  %98 = vmatpush1.msra.mxu0 %v33
  %99 = vmatprep.subr.mxu0 0.0
  %100 = vmatpush1.msra.mxu0 %v34
  %101 = vmatprep.subr.mxu0 0.0
  %102 = vmatpush1.msra.mxu0 %v35
  %103 = vmatprep.subr.mxu0 0.0
  %104 = vmatpush1.msra.mxu0 %v36
  %105 = vmatprep.subr.mxu0 0.0
  %106 = vmatpush1.msra.mxu0 %v37
  %107 = vmatprep.subr.mxu0 0.0
  %108 = vmatpush1.msra.mxu0 %v38
  %109 = vmatprep.subr.mxu0 0.0
  %110 = vmatpush1.msra.mxu0 %v39
  %111 = vmatprep.subr.mxu0 0.0
  %112 = vmatpush1.msra.mxu0 %v40
  %113 = vmatprep.subr.mxu0 0.0
  %114 = vmatpush1.msra.mxu0 %v41
  %115 = vmatprep.subr.mxu0 0.0
  %116 = vmatpush1.msra.mxu0 %v42
  %117 = vmatprep.subr.mxu0 0.0
  %118 = vmatpush1.msra.mxu0 %v43
  %119 = vmatprep.subr.mxu0 0.0
  %120 = vmatpush1.msra.mxu0 %v44
  %121 = vmatprep.subr.mxu0 0.0
  %122 = vmatpush1.msra.mxu0 %v45
  %123 = vmatprep.subr.mxu0 0.0
  %124 = vmatpush1.msra.mxu0 %v46
  %125 = vmatprep.subr.mxu0 0.0
  %126 = vmatpush1.msra.mxu0 %v47
  %127 = vmatprep.subr.mxu0 0.0
  %128 = vmatpush1.msra.mxu0 %v48
  %129 = vmatprep.subr.mxu0 0.0
  %130 = vmatpush1.msra.mxu0 %v49
  %131 = vmatprep.subr.mxu0 0.0
  %132 = vmatpush1.msra.mxu0 %v50
  %133 = vmatprep.subr.mxu0 0.0
  %134 = vmatpush1.msra.mxu0 %v51
  %135 = vmatprep.subr.mxu0 0.0
  %136 = vmatpush1.msra.mxu0 %v52
  %137 = vmatprep.subr.mxu0 0.0
  %138 = vmatpush1.msra.mxu0 %v53
  %139 = vmatprep.subr.mxu0 0.0
  %140 = vmatpush1.msra.mxu0 %v54
  %141 = vmatprep.subr.mxu0 0.0
  %142 = vmatpush1.msra.mxu0 %v55
  %143 = vmatprep.subr.mxu0 0.0
  %144 = vmatpush1.msra.mxu0 %v56
  %145 = vmatprep.subr.mxu0 0.0
  %146 = vmatpush1.msra.mxu0 %v57
  %147 = vmatprep.subr.mxu0 0.0
  %148 = vmatpush1.msra.mxu0 %v58
  %149 = vmatprep.subr.mxu0 0.0
  %150 = vmatpush1.msra.mxu0 %v59
  %151 = vmatprep.subr.mxu0 0.0
  %152 = vmatpush1.msra.mxu0 %v60
  %153 = vmatprep.subr.mxu0 0.0
  %154 = vmatpush1.msra.mxu0 %v61
  %155 = vmatprep.mubr.f32.mxu0 %v27
  %156 = vmatmul.mubr.f32.gmra.mrb[0].mxu0 %v26
  %v157 = vpop.f32.mrb[0].mxu0
  %v158 = vadd.f32 %v85, %v157
  %v159 = vpop.f32.mrb[0].mxu0
  %160 = vdwg.mxu0
  %161 = vmatprep.subr.mxu0 0.0
  %162 = vmatpush1.msra.mxu0 %v62
  %163 = vmatprep.subr.mxu0 0.0
  %164 = vmatpush1.msra.mxu0 %v63
  %165 = vmatprep.subr.mxu0 0.0
  %166 = vmatpush1.msra.mxu0 %v64
  %167 = vmatprep.subr.mxu0 0.0
  %168 = vmatpush1.msra.mxu0 %v65
  %169 = vmatprep.subr.mxu0 0.0
  %170 = vmatpush1.msra.mxu0 %v66
  %171 = vmatprep.subr.mxu0 0.0
  %172 = vmatpush1.msra.mxu0 %v67
  %173 = vmatprep.subr.mxu0 0.0
  %174 = vmatpush1.msra.mxu0 %v68
  %175 = vmatprep.subr.mxu0 0.0
  %176 = vmatpush1.msra.mxu0 %v69
  %177 = vmatprep.subr.mxu0 0.0
  %178 = vmatpush1.msra.mxu0 %v70
  %179 = vmatprep.subr.mxu0 0.0
  %180 = vmatpush1.msra.mxu0 %v71
  %181 = vmatprep.subr.mxu0 0.0
  %182 = vmatpush1.msra.mxu0 %v72
  %183 = vmatprep.subr.mxu0 0.0
  %184 = vmatpush1.msra.mxu0 %v73
  %185 = vmatprep.subr.mxu0 0.0
  %186 = vmatpush1.msra.mxu0 %v74
  %187 = vmatprep.subr.mxu0 0.0
  %188 = vmatpush1.msra.mxu0 %v75
  %189 = vmatprep.subr.mxu0 0.0
  %190 = vmatpush1.msra.mxu0 %v76
  %191 = vmatprep.subr.mxu0 0.0
  %192 = vmatpush1.msra.mxu0 %v77
  %193 = vmatprep.subr.mxu0 0.0
  %194 = vmatpush1.msra.mxu0 %v78
  %195 = vmatprep.subr.mxu0 0.0
  %196 = vmatpush1.msra.mxu0 %v79
  %197 = vmatprep.subr.mxu0 0.0
  %198 = vmatpush1.msra.mxu0 0.0
  %199 = vmatprep.subr.mxu0 0.0
  %200 = vmatpush1.msra.mxu0 0.0
  %201 = vmatprep.subr.mxu0 0.0
  %202 = vmatpush1.msra.mxu0 0.0
  %203 = vmatprep.subr.mxu0 0.0
  %204 = vmatpush1.msra.mxu0 0.0
  %205 = vmatprep.subr.mxu0 0.0
  %206 = vmatpush1.msra.mxu0 0.0
  %207 = vmatprep.subr.mxu0 0.0
  %208 = vmatpush1.msra.mxu0 0.0
  %209 = vmatprep.subr.mxu0 0.0
  %210 = vmatpush1.msra.mxu0 0.0
  %211 = vmatprep.subr.mxu0 0.0
  %212 = vmatpush1.msra.mxu0 0.0
  %213 = vmatprep.subr.mxu0 0.0
  %214 = vmatpush1.msra.mxu0 0.0
  %215 = vmatprep.subr.mxu0 0.0
  %216 = vmatpush1.msra.mxu0 0.0
  %217 = vmatprep.subr.mxu0 0.0
  %218 = vmatpush1.msra.mxu0 0.0
  %219 = vmatprep.subr.mxu0 0.0
  %220 = vmatpush1.msra.mxu0 0.0
  %221 = vmatprep.subr.mxu0 0.0
  %222 = vmatpush1.msra.mxu0 0.0
  %223 = vmatprep.subr.mxu0 0.0
  %224 = vmatpush1.msra.mxu0 0.0
  %225 = vmatprep.mubr.f32.mxu0 %v89
  %226 = vmatmul.mubr.f32.gmra.mrb[0].mxu0 %v28
  %v227 = vpop.f32.mrb[0].mxu0
  %v228 = vadd.f32 %v158, %v227
  %v229 = vpop.f32.mrb[0].mxu0
  %230 = vdwg.mxu0
  %v231 = vmax.f32 %v228, 0.0
  %v232 = vld [vmem:[%s3] sm:$0xff]
  %v233 = vld [vmem:[%s3 + $0x8] sm:$0xff]
  %v234 = vld [vmem:[%s3 + $0x10] sm:$0xff]
  %v235 = vld [vmem:[%s3 + $0x18] sm:$0xff]
  %v236 = vld [vmem:[%s3 + $0x20] sm:$0xff]
  %v237 = vld [vmem:[%s3 + $0x28] sm:$0xff]
  %v238 = vld [vmem:[%s3 + $0x30] sm:$0xff]
  %v239 = vld [vmem:[%s3 + $0x38] sm:$0xff]
  %v240 = vld [vmem:[%s3 + $0x40] sm:$0xff]
  %v241 = vld [vmem:[%s3 + $0x48] sm:$0xff]
  %v242 = vld [vmem:[%s3 + $0x50] sm:$0xff]
  %v243 = vld [vmem:[%s3 + $0x58] sm:$0xff]
  %v244 = vld [vmem:[%s3 + $0x60] sm:$0xff]
  %v245 = vld [vmem:[%s3 + $0x68] sm:$0xff]
  %v246 = vld [vmem:[%s3 + $0x70] sm:$0xff]
  %v247 = vld [vmem:[%s3 + $0x78] sm:$0xff]
  %v248 = vld [vmem:[%s4] sm:$0x1]
  %v250 = vlaneseq
  %v251 = vshrl.u32 %v250, 7
  %v252 = vsub.s32 0, %v251
  %v253 = vrot.slane %v248, %v252
  %255 = vmatprep.subr.mxu0 0.0
  %256 = vmatpush1.msra.mxu0 %v232
  %257 = vmatprep.subr.mxu0 0.0
  %258 = vmatpush1.msra.mxu0 %v233
  %259 = vmatprep.subr.mxu0 0.0
  %260 = vmatpush1.msra.mxu0 %v234
  %261 = vmatprep.subr.mxu0 0.0
  %262 = vmatpush1.msra.mxu0 %v235
  %263 = vmatprep.subr.mxu0 0.0
  %264 = vmatpush1.msra.mxu0 %v236
  %265 = vmatprep.subr.mxu0 0.0
  %266 = vmatpush1.msra.mxu0 %v237
  %267 = vmatprep.subr.mxu0 0.0
  %268 = vmatpush1.msra.mxu0 %v238
  %269 = vmatprep.subr.mxu0 0.0
  %270 = vmatpush1.msra.mxu0 %v239
  %271 = vmatprep.subr.mxu0 0.0
  %272 = vmatpush1.msra.mxu0 %v240
  %273 = vmatprep.subr.mxu0 0.0
  %274 = vmatpush1.msra.mxu0 %v241
  %275 = vmatprep.subr.mxu0 0.0
  %276 = vmatpush1.msra.mxu0 %v242
  %277 = vmatprep.subr.mxu0 0.0
  %278 = vmatpush1.msra.mxu0 %v243
  %279 = vmatprep.subr.mxu0 0.0
  %280 = vmatpush1.msra.mxu0 %v244
  %281 = vmatprep.subr.mxu0 0.0
  %282 = vmatpush1.msra.mxu0 %v245
  %283 = vmatprep.subr.mxu0 0.0
  %284 = vmatpush1.msra.mxu0 %v246
  %285 = vmatprep.subr.mxu0 0.0
  %286 = vmatpush1.msra.mxu0 %v247
  %287 = vmatprep.subr.mxu0 0.0
  %288 = vmatpush1.msra.mxu0 0.0
  %289 = vmatprep.subr.mxu0 0.0
  %290 = vmatpush1.msra.mxu0 0.0
  %291 = vmatprep.subr.mxu0 0.0
  %292 = vmatpush1.msra.mxu0 0.0
  %293 = vmatprep.subr.mxu0 0.0
  %294 = vmatpush1.msra.mxu0 0.0
  %295 = vmatprep.subr.mxu0 0.0
  %296 = vmatpush1.msra.mxu0 0.0
  %297 = vmatprep.subr.mxu0 0.0
  %298 = vmatpush1.msra.mxu0 0.0
  %299 = vmatprep.subr.mxu0 0.0
  %300 = vmatpush1.msra.mxu0 0.0
  %301 = vmatprep.subr.mxu0 0.0
  %302 = vmatpush1.msra.mxu0 0.0
  %303 = vmatprep.subr.mxu0 0.0
  %304 = vmatpush1.msra.mxu0 0.0
  %305 = vmatprep.subr.mxu0 0.0
  %306 = vmatpush1.msra.mxu0 0.0
  %307 = vmatprep.subr.mxu0 0.0
  %308 = vmatpush1.msra.mxu0 0.0
  %309 = vmatprep.subr.mxu0 0.0
  %310 = vmatpush1.msra.mxu0 0.0
  %311 = vmatprep.subr.mxu0 0.0
  %312 = vmatpush1.msra.mxu0 0.0
  %313 = vmatprep.subr.mxu0 0.0
  %314 = vmatpush1.msra.mxu0 0.0
  %315 = vmatprep.subr.mxu0 0.0
  %316 = vmatpush1.msra.mxu0 0.0
  %317 = vmatprep.subr.mxu0 0.0
  %318 = vmatpush1.msra.mxu0 0.0
  %319 = vmatprep.mubr.f32.mxu0 0.0
  %320 = vmatmul.mubr.f32.gmra.mrb[0].mxu0 %v231
  %v321 = vpop.f32.mrb[0].mxu0
  %v322 = vadd.f32 %v253, %v321
  %v323 = vpop.f32.mrb[0].mxu0
  %324 = vdwg.mxu0
  %v325 = vmax.f32 %v322, 0.0
  %v326 = vld [vmem:[%s5] sm:$0xff]
  %v327 = vld [vmem:[%s5 + $0x8] sm:$0xff]
  %v328 = vld [vmem:[%s5 + $0x10] sm:$0xff]
  %v329 = vld [vmem:[%s5 + $0x18] sm:$0xff]
  %v330 = vld [vmem:[%s5 + $0x20] sm:$0xff]
  %v331 = vld [vmem:[%s5 + $0x28] sm:$0xff]
  %v332 = vld [vmem:[%s5 + $0x30] sm:$0xff]
  %v333 = vld [vmem:[%s5 + $0x38] sm:$0xff]
  %v334 = vld [vmem:[%s5 + $0x40] sm:$0xff]
  %v335 = vld [vmem:[%s5 + $0x48] sm:$0xff]
  %v336 = vld [vmem:[%s5 + $0x50] sm:$0xff]
  %v337 = vld [vmem:[%s5 + $0x58] sm:$0xff]
  %v338 = vld [vmem:[%s5 + $0x60] sm:$0xff]
  %v339 = vld [vmem:[%s5 + $0x68] sm:$0xff]
  %v340 = vld [vmem:[%s5 + $0x70] sm:$0xff]
  %v341 = vld [vmem:[%s5 + $0x78] sm:$0xff]
  %v342 = vld [vmem:[%s6] sm:$0x1]
  %v344 = vlaneseq
  %v345 = vshrl.u32 %v344, 7
  %v346 = vsub.s32 0, %v345
  %v347 = vrot.slane %v342, %v346
  %349 = vmatprep.subr.mxu0 0.0
  %350 = vmatpush1.msra.mxu0 %v326
  %351 = vmatprep.subr.mxu0 0.0
  %352 = vmatpush1.msra.mxu0 %v327
  %353 = vmatprep.subr.mxu0 0.0
  %354 = vmatpush1.msra.mxu0 %v328
  %355 = vmatprep.subr.mxu0 0.0
  %356 = vmatpush1.msra.mxu0 %v329
  %357 = vmatprep.subr.mxu0 0.0
  %358 = vmatpush1.msra.mxu0 %v330
  %359 = vmatprep.subr.mxu0 0.0
  %360 = vmatpush1.msra.mxu0 %v331
  %361 = vmatprep.subr.mxu0 0.0
  %362 = vmatpush1.msra.mxu0 %v332
  %363 = vmatprep.subr.mxu0 0.0
  %364 = vmatpush1.msra.mxu0 %v333
  %365 = vmatprep.subr.mxu0 0.0
  %366 = vmatpush1.msra.mxu0 %v334
  %367 = vmatprep.subr.mxu0 0.0
  %368 = vmatpush1.msra.mxu0 %v335
  %369 = vmatprep.subr.mxu0 0.0
  %370 = vmatpush1.msra.mxu0 %v336
  %371 = vmatprep.subr.mxu0 0.0
  %372 = vmatpush1.msra.mxu0 %v337
  %373 = vmatprep.subr.mxu0 0.0
  %374 = vmatpush1.msra.mxu0 %v338
  %375 = vmatprep.subr.mxu0 0.0
  %376 = vmatpush1.msra.mxu0 %v339
  %377 = vmatprep.subr.mxu0 0.0
  %378 = vmatpush1.msra.mxu0 %v340
  %379 = vmatprep.subr.mxu0 0.0
  %380 = vmatpush1.msra.mxu0 %v341
  %381 = vmatprep.subr.mxu0 0.0
  %382 = vmatpush1.msra.mxu0 0.0
  %383 = vmatprep.subr.mxu0 0.0
  %384 = vmatpush1.msra.mxu0 0.0
  %385 = vmatprep.subr.mxu0 0.0
  %386 = vmatpush1.msra.mxu0 0.0
  %387 = vmatprep.subr.mxu0 0.0
  %388 = vmatpush1.msra.mxu0 0.0
  %389 = vmatprep.subr.mxu0 0.0
  %390 = vmatpush1.msra.mxu0 0.0
  %391 = vmatprep.subr.mxu0 0.0
  %392 = vmatpush1.msra.mxu0 0.0
  %393 = vmatprep.subr.mxu0 0.0
  %394 = vmatpush1.msra.mxu0 0.0
  %395 = vmatprep.subr.mxu0 0.0
  %396 = vmatpush1.msra.mxu0 0.0
  %397 = vmatprep.subr.mxu0 0.0
  %398 = vmatpush1.msra.mxu0 0.0
  %399 = vmatprep.subr.mxu0 0.0
  %400 = vmatpush1.msra.mxu0 0.0
  %401 = vmatprep.subr.mxu0 0.0
  %402 = vmatpush1.msra.mxu0 0.0
  %403 = vmatprep.subr.mxu0 0.0
  %404 = vmatpush1.msra.mxu0 0.0
  %405 = vmatprep.subr.mxu0 0.0
  %406 = vmatpush1.msra.mxu0 0.0
  %407 = vmatprep.subr.mxu0 0.0
  %408 = vmatpush1.msra.mxu0 0.0
  %409 = vmatprep.subr.mxu0 0.0
  %410 = vmatpush1.msra.mxu0 0.0
  %411 = vmatprep.subr.mxu0 0.0
  %412 = vmatpush1.msra.mxu0 0.0
  %413 = vmatprep.mubr.f32.mxu0 0.0
  %414 = vmatmul.mubr.f32.gmra.mrb[0].mxu0 %v325
  %v415 = vpop.f32.mrb[0].mxu0
  %v416 = vadd.f32 %v347, %v415
  %v417 = vpop.f32.mrb[0].mxu0
  %418 = vdwg.mxu0
  %419 = vst [vmem:[%s7] sm:$0xff] %v416
  // Predicated region
  $region30: #{net_forward.9} parent=0 // pred_check
    _
  $region31: #{net_forward.9} parent=0 // pred_check_branch
    %421 = sbr.rel (0) target = $region33
  $region32: #{net_forward.9} parent=0 // pred_region
    _
  $region33: #{net_forward.9} parent=0 // pred_fallthru
    _
  // Predicated region
  $region34: #{net_forward.9} parent=0 // pred_check
    _
  $region35: #{net_forward.9} parent=0 // pred_check_branch
    %423 = sbr.rel (0) target = $region37
  $region36: #{net_forward.9} parent=0 // pred_region
    _
  $region37: #{net_forward.9} parent=0 // pred_fallthru
    _

</llo_original>
